<compile_context>
chip_gen: v7x
topology: tpu7x:2x2x1
jax: 0.10.0
libtpu: 0.0.40
codegen_flags: <defaults>
</compile_context>

<pallas_src>
import math

import jax
import jax.numpy as jnp
from jax.experimental import pallas as pl
from jax.experimental.pallas import tpu as pltpu

_EPS = 1e-5  # nn.LayerNorm default


# ---------------------------------------------------------------------------
# Kernels
# ---------------------------------------------------------------------------

def _fused_kernel(x_ref, w0_ref, w1_ref, b_ref, o_ref):
    """Fused 2x2 gather + LayerNorm(4C) + (4C -> 2C) projection.

    x_ref : (th, 2, W2, 2C)  th image row-pairs, both row phases (contiguous)
    w0_ref: (2C, O)          folded-weight rows for phase p=0 channels [x0|x2]
    w1_ref: (2C, O)          folded-weight rows for phase p=1 channels [x1|x3]
    b_ref : (1, O)           beta @ W^T (f32)
    o_ref : (th*W2, O)
    """
    th, _, w2, two_c = x_ref.shape
    rows = th * w2
    inv_f = 1.0 / (2 * two_c)                       # 1 / 4C

    xt = x_ref[...]
    # Phase slices; flatten (th, W2, 2C) -> (th*W2, 2C) is layout-preserving
    # because W2 % 8 == 0 (guaranteed by the wrapper for this path).
    xp0 = xt[:, 0].astype(jnp.float32).reshape(rows, two_c)    # [x0 | x2]
    xp1 = xt[:, 1].astype(jnp.float32).reshape(rows, two_c)    # [x1 | x3]

    # LayerNorm statistics over the full 4C features (both phases).
    mean = (jnp.sum(xp0, axis=-1, keepdims=True)
            + jnp.sum(xp1, axis=-1, keepdims=True)) * inv_f
    d0 = xp0 - mean
    d1 = xp1 - mean
    var = (jnp.sum(d0 * d0, axis=-1, keepdims=True)
           + jnp.sum(d1 * d1, axis=-1, keepdims=True)) * inv_f
    rstd = jax.lax.rsqrt(var + _EPS)

    h0 = (d0 * rstd).astype(w0_ref.dtype)
    h1 = (d1 * rstd).astype(w1_ref.dtype)
    acc = jnp.dot(h0, w0_ref[...], preferred_element_type=jnp.float32)
    acc = acc + jnp.dot(h1, w1_ref[...], preferred_element_type=jnp.float32)
    o_ref[...] = (acc + b_ref[...]).astype(o_ref.dtype)


def _merged_kernel(x_ref, w_ref, b_ref, o_ref):
    """LayerNorm(4C) + projection on a pre-gathered (rows, 4C) tile."""
    inv_f = 1.0 / x_ref.shape[-1]
    x = x_ref[...].astype(jnp.float32)
    mean = jnp.sum(x, axis=-1, keepdims=True) * inv_f
    d = x - mean
    var = jnp.sum(d * d, axis=-1, keepdims=True) * inv_f
    h = (d * jax.lax.rsqrt(var + _EPS)).astype(w_ref.dtype)
    acc = jnp.dot(h, w_ref[...], preferred_element_type=jnp.float32)
    o_ref[...] = (acc + b_ref[...]).astype(o_ref.dtype)


# ---------------------------------------------------------------------------
# Hardware queries (best-effort, never fatal)
# ---------------------------------------------------------------------------

def _vmem_capacity_bytes():
    try:
        return int(pltpu.get_tpu_info().vmem_capacity_bytes)
    except Exception:
        return 128 * 2**20


def _num_tensorcores_per_chip():
    try:
        kind = jax.devices()[0].device_kind.lower()
    except Exception:
        return 1
    # v4 / v5p (megacore) and v7x expose 2 TensorCores behind one device.
    return 2 if ("v4" in kind or "v5p" in kind or "7" in kind) else 1


# ---------------------------------------------------------------------------
# Forward paths
# ---------------------------------------------------------------------------

def _forward_fused(x, w_folded, bias, *, B, H2, W2, C, out_c, matmul_dtype,
                   tile_tokens, row_pairs_per_block, vmem_cap, vmem_budget,
                   n_cores):
    R = B * H2                    # image row-pairs
    M = R * W2                    # merged tokens
    two_c = 2 * C
    four_c = 4 * C

    # Phase-permuted weight slabs.  Merged channel order (torch) is
    # [x0|x1|x2|x3] with x0=(even row, even col), x1=(odd,even),
    # x2=(even,odd), x3=(odd,odd).  The p=0 input slab carries [x0|x2],
    # the p=1 slab carries [x1|x3].
    w_p0 = jnp.concatenate([w_folded[0:C], w_folded[2 * C:3 * C]],
                           axis=0).astype(matmul_dtype)
    w_p1 = jnp.concatenate([w_folded[C:2 * C], w_folded[3 * C:4 * C]],
                           axis=0).astype(matmul_dtype)

    # Free (contiguous) reshape: (B, N, C) -> (B*H/2, 2, W/2, 2C).
    x_view = x.reshape(R, 2, W2, two_c)

    in_isz = jnp.dtype(x.dtype).itemsize
    out_isz = in_isz
    w_isz = jnp.dtype(matmul_dtype).itemsize

    def footprint(th):
        rows = th * W2
        return (2 * rows * four_c * in_isz       # input tile, double-buffered
                + 2 * rows * out_c * out_isz     # output tile, double-buffered
                + 2 * two_c * out_c * w_isz      # weight slabs (single-buffer)
                + out_c * 4                      # bias
                + 3 * rows * four_c * 4)         # in-kernel f32 temporaries

    if row_pairs_per_block is not None:
        th = max(1, min(int(row_pairs_per_block), R))
    else:
        th = max(1, min(R, pl.cdiv(int(tile_tokens), W2)))
        if n_cores > 1 and R >= 4:
            th = min(th, max(1, R // 4))         # >=4 grid steps for 2 TCs
        while footprint(th) > vmem_budget and th > 1:
            th = max(1, th // 2)

    grid_m = pl.cdiv(R, th)
    block_rows = th * W2
    vmem_limit = int(min(vmem_cap * 0.85,
                         max(32 * 2**20, footprint(th) + 8 * 2**20)))

    def run(single_buffer_weights):
        wmode = pl.Buffered(1) if single_buffer_weights else None
        return pl.pallas_call(
            _fused_kernel,
            out_shape=jax.ShapeDtypeStruct((M, out_c), x.dtype),
            grid_spec=pltpu.PrefetchScalarGridSpec(
                num_scalar_prefetch=0,
                grid=(grid_m,),
                in_specs=[
                    pl.BlockSpec((th, 2, W2, two_c), lambda i: (i, 0, 0, 0)),
                    pl.BlockSpec((two_c, out_c), lambda i: (0, 0),
                                 pipeline_mode=wmode),
                    pl.BlockSpec((two_c, out_c), lambda i: (0, 0),
                                 pipeline_mode=wmode),
                    pl.BlockSpec((1, out_c), lambda i: (0, 0),
                                 pipeline_mode=wmode),
                ],
                out_specs=pl.BlockSpec((block_rows, out_c), lambda i: (i, 0)),
            ),
            compiler_params=pltpu.CompilerParams(
                dimension_semantics=("parallel",),
                vmem_limit_bytes=vmem_limit,
            ),
        )(x_view, w_p0, w_p1, bias)

    try:
        out_flat = run(True)
    except Exception:
        out_flat = run(False)     # single-buffer hint unsupported -> default

    return out_flat.reshape(B, H2 * W2, out_c)


def _forward_gathered(x, w_folded, bias, *, B, N, H, C, out_c, matmul_dtype,
                      tile_tokens, vmem_cap, vmem_budget, n_cores):
    # Fallback when W/2 is not a multiple of 8: build the merged (M, 4C)
    # matrix with an XLA gather, then run LN + projection in Pallas.
    # TODO(synk): extend the fused-gather path to unaligned W/2 (needs an
    # in-kernel relayout for the (th, W2, 2C) -> (th*W2, 2C) flatten).
    four_c = 4 * C
    xg = x.reshape(B, H, H, C)
    x0 = xg[:, 0::2, 0::2, :]
    x1 = xg[:, 1::2, 0::2, :]
    x2 = xg[:, 0::2, 1::2, :]
    x3 = xg[:, 1::2, 1::2, :]
    merged = jnp.concatenate([x0, x1, x2, x3], -1).reshape(B * (N // 4), four_c)
    M = merged.shape[0]

    w = w_folded.astype(matmul_dtype)

    in_isz = jnp.dtype(merged.dtype).itemsize
    out_isz = in_isz
    w_isz = jnp.dtype(matmul_dtype).itemsize

    def footprint(t):
        return (2 * t * four_c * in_isz
                + 2 * t * out_c * out_isz
                + four_c * out_c * w_isz
                + out_c * 4
                + 3 * t * four_c * 4)

    if M <= 8:
        tm = M
    else:
        tm = min(int(tile_tokens), M)
        tm = max(8, (tm // 8) * 8)
        if n_cores > 1 and M >= 32:
            tm = min(tm, max(8, ((M // 4) // 8) * 8))
        while footprint(tm) > vmem_budget and tm > 8:
            tm = max(8, (tm // 2 // 8) * 8)

    grid_m = pl.cdiv(M, tm)
    vmem_limit = int(min(vmem_cap * 0.85,
                         max(32 * 2**20, footprint(tm) + 8 * 2**20)))

    def run(single_buffer_weights):
        wmode = pl.Buffered(1) if single_buffer_weights else None
        return pl.pallas_call(
            _merged_kernel,
            out_shape=jax.ShapeDtypeStruct((M, out_c), x.dtype),
            grid_spec=pltpu.PrefetchScalarGridSpec(
                num_scalar_prefetch=0,
                grid=(grid_m,),
                in_specs=[
                    pl.BlockSpec((tm, four_c), lambda i: (i, 0)),
                    pl.BlockSpec((four_c, out_c), lambda i: (0, 0),
                                 pipeline_mode=wmode),
                    pl.BlockSpec((1, out_c), lambda i: (0, 0),
                                 pipeline_mode=wmode),
                ],
                out_specs=pl.BlockSpec((tm, out_c), lambda i: (i, 0)),
            ),
            compiler_params=pltpu.CompilerParams(
                dimension_semantics=("parallel",),
                vmem_limit_bytes=vmem_limit,
            ),
        )(merged, w, bias)

    try:
        out_flat = run(True)
    except Exception:
        out_flat = run(False)

    return out_flat.reshape(B, N // 4, out_c)


# ---------------------------------------------------------------------------
# Public wrapper
# ---------------------------------------------------------------------------

def patch_merging(x, gamma, beta, weight, *, tile_tokens=1024,
                  row_pairs_per_block=None, matmul_dtype=None):
    """Swin PatchMerging forward.

    x: (B, N, C), N = H*W with H == W and even.  gamma/beta: (4C,)
    LayerNorm affine.  weight: (2C, 4C) nn.Linear weight (bias-free).
    Returns (B, N//4, 2C).
    """
    B, N, C = x.shape
    H = math.isqrt(N)
    assert H * H == N, "PatchMerging expects a square token grid"
    assert H % 2 == 0, "PatchMerging expects even spatial extent"
    H2 = W2 = H // 2
    out_c = 2 * C

    if matmul_dtype is None:
        # Keep bf16 activations on the native bf16 MXU path even if the
        # parameters are stored in f32 (accumulation stays f32 either way).
        matmul_dtype = (jnp.bfloat16 if x.dtype == jnp.bfloat16
                        else jnp.result_type(x.dtype, weight.dtype))

    # Fold the LayerNorm affine into the projection (once, outside the grid):
    #   out = (xhat*gamma + beta) @ W^T = xhat @ (gamma[:,None]*W^T) + beta@W^T
    w_t = weight.astype(jnp.float32).T                          # (4C, 2C)
    w_folded = gamma.astype(jnp.float32)[:, None] * w_t
    bias = (beta.astype(jnp.float32) @ w_t).reshape(1, out_c)   # f32

    vmem_cap = _vmem_capacity_bytes()
    vmem_budget = int(vmem_cap * 0.70)   # ~45 MiB on v7x, ~90 MiB on v5e/v6e
    n_cores = _num_tensorcores_per_chip()

    if W2 % 8 == 0:
        return _forward_fused(
            x, w_folded, bias, B=B, H2=H2, W2=W2, C=C, out_c=out_c,
            matmul_dtype=matmul_dtype, tile_tokens=tile_tokens,
            row_pairs_per_block=row_pairs_per_block,
            vmem_cap=vmem_cap, vmem_budget=vmem_budget, n_cores=n_cores)
    return _forward_gathered(
        x, w_folded, bias, B=B, N=N, H=H, C=C, out_c=out_c,
        matmul_dtype=matmul_dtype, tile_tokens=tile_tokens,
        vmem_cap=vmem_cap, vmem_budget=vmem_budget, n_cores=n_cores)


# ---------------------------------------------------------------------------
# Reference + self-test
# ---------------------------------------------------------------------------

def _reference(x, gamma, beta, weight):
    B, N, C = x.shape
    H = math.isqrt(N)
    xg = x.reshape(B, H, H, C)
    x0 = xg[:, 0::2, 0::2, :]
    x1 = xg[:, 1::2, 0::2, :]
    x2 = xg[:, 0::2, 1::2, :]
    x3 = xg[:, 1::2, 1::2, :]
    m = jnp.concatenate([x0, x1, x2, x3], -1).reshape(B, N // 4, 4 * C)
    mu = jnp.mean(m, -1, keepdims=True)
    var = jnp.mean((m - mu) ** 2, -1, keepdims=True)
    y = (m - mu) / jnp.sqrt(var + _EPS) * gamma + beta
    return y @ weight.T


if __name__ == "__main__":
    key = jax.random.PRNGKey(0)
    k1, k2, k3, k4, k5, k6 = jax.random.split(key, 6)

    # Case 1: fused-gather path (W/2 = 8 is sublane aligned), auto tiling.
    B, H, C = 2, 16, 32
    N = H * H
    x = jax.random.normal(k1, (B, N, C), jnp.float32) + 0.5   # non-zero mean
    gamma = 1.0 + 0.1 * jax.random.normal(k2, (4 * C,), jnp.float32)
    beta = 0.1 * jax.random.normal(k3, (4 * C,), jnp.float32)
    weight = 0.05 * jax.random.normal(k4, (2 * C, 4 * C), jnp.float32)

    out = patch_merging(x, gamma, beta, weight)
    jax.block_until_ready(out)
    ref = _reference(x, gamma, beta, weight)
    assert out.shape == (B, N // 4, 2 * C)
    assert jnp.allclose(out, ref, atol=1e-4, rtol=1e-4)

    # Case 2: fused path with a partial edge block (3 row-pairs per block
    # does not divide B*H/2 = 16) -> exercises masked edge stores.
    out_e = patch_merging(x, gamma, beta, weight, row_pairs_per_block=3)
    jax.block_until_ready(out_e)
    assert jnp.allclose(out_e, ref, atol=1e-4, rtol=1e-4)

    # Case 3: fallback path (W/2 = 5 not sublane aligned; 25 merged tokens
    # are not a multiple of the row tile either).
    B3, H3, C3 = 1, 10, 32
    N3 = H3 * H3
    x3 = jax.random.normal(k5, (B3, N3, C3), jnp.float32) - 0.25
    gamma3 = 1.0 + 0.05 * jax.random.normal(k6, (4 * C3,), jnp.float32)
    beta3 = 0.02 * jnp.arange(4 * C3, dtype=jnp.float32) / (4 * C3)
    weight3 = 0.05 * jax.random.normal(k4, (2 * C3, 4 * C3), jnp.float32)

    out3 = patch_merging(x3, gamma3, beta3, weight3)
    jax.block_until_ready(out3)
    ref3 = _reference(x3, gamma3, beta3, weight3)
    assert out3.shape == (B3, N3 // 4, 2 * C3)
    assert jnp.allclose(out3, ref3, atol=1e-4, rtol=1e-4)

    print("KERNEL_OK")
</pallas_src>

<mosaic_0001>
module attributes {stable_mosaic.version = 11 : i64} {
  func.func @_fused_kernel(%arg0: i32, %arg1: memref<16x2x8x64xf32, #tpu.memory_space<vmem>>, %arg2: memref<64x64xf32, #tpu.memory_space<vmem>>, %arg3: memref<64x64xf32, #tpu.memory_space<vmem>>, %arg4: memref<1x64xf32, #tpu.memory_space<vmem>>, %arg5: memref<128x64xf32, #tpu.memory_space<vmem>>) attributes {dimension_semantics = [#tpu.dimension_semantics<parallel>], iteration_bounds = array<i64: 1>, scalar_prefetch = 0 : i64, scratch_operands = 0 : i64, tpu.core_type = #tpu.core_type<tc>, window_params = [{transform_indices = @transform_0, window_bounds = array<i64: 16, 2, 8, 64>}, {pipeline_mode = #tpu.pipeline_mode<synchronous>, transform_indices = @transform_1, window_bounds = array<i64: 64, 64>}, {pipeline_mode = #tpu.pipeline_mode<synchronous>, transform_indices = @transform_2, window_bounds = array<i64: 64, 64>}, {pipeline_mode = #tpu.pipeline_mode<synchronous>, transform_indices = @transform_3, window_bounds = array<i64: 1, 64>}, {transform_indices = @transform_4, window_bounds = array<i64: 128, 64>}]} {
    %c0 = arith.constant 0 : index
    %c0_0 = arith.constant 0 : index
    %c0_1 = arith.constant 0 : index
    %c0_2 = arith.constant 0 : index
    %0 = vector.load %arg1[%c0, %c0_0, %c0_1, %c0_2] : memref<16x2x8x64xf32, #tpu.memory_space<vmem>>, vector<16x2x8x64xf32>
    %1 = vector.extract_strided_slice %0 {offsets = [0, 0, 0, 0], sizes = [16, 1, 8, 64], strides = [1, 1, 1, 1]} : vector<16x2x8x64xf32> to vector<16x1x8x64xf32>
    %2 = vector.shape_cast %1 : vector<16x1x8x64xf32> to vector<16x8x64xf32>
    %3 = vector.shape_cast %2 : vector<16x8x64xf32> to vector<128x64xf32>
    %4 = vector.extract_strided_slice %0 {offsets = [0, 1, 0, 0], sizes = [16, 1, 8, 64], strides = [1, 1, 1, 1]} : vector<16x2x8x64xf32> to vector<16x1x8x64xf32>
    %5 = vector.shape_cast %4 : vector<16x1x8x64xf32> to vector<16x8x64xf32>
    %6 = vector.shape_cast %5 : vector<16x8x64xf32> to vector<128x64xf32>
    %cst = arith.constant dense<0.000000e+00> : vector<128xf32>
    %7 = vector.multi_reduction <add>, %3, %cst [1] : vector<128x64xf32> to vector<128xf32>
    %8 = vector.shape_cast %7 : vector<128xf32> to vector<128x1xf32>
    %cst_3 = arith.constant dense<0.000000e+00> : vector<128xf32>
    %9 = vector.multi_reduction <add>, %6, %cst_3 [1] : vector<128x64xf32> to vector<128xf32>
    %10 = vector.shape_cast %9 : vector<128xf32> to vector<128x1xf32>
    %11 = arith.addf %8, %10 : vector<128x1xf32>
    %cst_4 = arith.constant 7.812500e-03 : f32
    %12 = vector.broadcast %cst_4 : f32 to vector<128x1xf32>
    %13 = arith.mulf %11, %12 : vector<128x1xf32>
    %14 = vector.broadcast %13 : vector<128x1xf32> to vector<128x64xf32>
    %15 = arith.subf %3, %14 : vector<128x64xf32>
    %16 = vector.broadcast %13 : vector<128x1xf32> to vector<128x64xf32>
    %17 = arith.subf %6, %16 : vector<128x64xf32>
    %18 = arith.mulf %15, %15 : vector<128x64xf32>
    %cst_5 = arith.constant dense<0.000000e+00> : vector<128xf32>
    %19 = vector.multi_reduction <add>, %18, %cst_5 [1] : vector<128x64xf32> to vector<128xf32>
    %20 = vector.shape_cast %19 : vector<128xf32> to vector<128x1xf32>
    %21 = arith.mulf %17, %17 : vector<128x64xf32>
    %cst_6 = arith.constant dense<0.000000e+00> : vector<128xf32>
    %22 = vector.multi_reduction <add>, %21, %cst_6 [1] : vector<128x64xf32> to vector<128xf32>
    %23 = vector.shape_cast %22 : vector<128xf32> to vector<128x1xf32>
    %24 = arith.addf %20, %23 : vector<128x1xf32>
    %cst_7 = arith.constant 7.812500e-03 : f32
    %25 = vector.broadcast %cst_7 : f32 to vector<128x1xf32>
    %26 = arith.mulf %24, %25 : vector<128x1xf32>
    %cst_8 = arith.constant 9.99999974E-6 : f32
    %27 = vector.broadcast %cst_8 : f32 to vector<128x1xf32>
    %28 = arith.addf %26, %27 : vector<128x1xf32>
    %29 = math.rsqrt %28 : vector<128x1xf32>
    %30 = vector.broadcast %29 : vector<128x1xf32> to vector<128x64xf32>
    %31 = arith.mulf %15, %30 : vector<128x64xf32>
    %32 = vector.broadcast %29 : vector<128x1xf32> to vector<128x64xf32>
    %33 = arith.mulf %17, %32 : vector<128x64xf32>
    %c0_9 = arith.constant 0 : index
    %c0_10 = arith.constant 0 : index
    %34 = vector.load %arg2[%c0_9, %c0_10] : memref<64x64xf32, #tpu.memory_space<vmem>>, vector<64x64xf32>
    %cst_11 = arith.constant dense<0.000000e+00> : vector<128x64xf32>
    %35 = tpu.matmul %31, %34, %cst_11 {dimension_numbers = #tpu.dot_dimension_numbers<[1], [0], [0], [1], [0, 0, 1, 1], [], []>} : vector<128x64xf32>, vector<64x64xf32>, vector<128x64xf32> -> vector<128x64xf32>
    %c0_12 = arith.constant 0 : index
    %c0_13 = arith.constant 0 : index
    %36 = vector.load %arg3[%c0_12, %c0_13] : memref<64x64xf32, #tpu.memory_space<vmem>>, vector<64x64xf32>
    %cst_14 = arith.constant dense<0.000000e+00> : vector<128x64xf32>
    %37 = tpu.matmul %33, %36, %cst_14 {dimension_numbers = #tpu.dot_dimension_numbers<[1], [0], [0], [1], [0, 0, 1, 1], [], []>} : vector<128x64xf32>, vector<64x64xf32>, vector<128x64xf32> -> vector<128x64xf32>
    %38 = arith.addf %35, %37 : vector<128x64xf32>
    %c0_15 = arith.constant 0 : index
    %c0_16 = arith.constant 0 : index
    %39 = vector.load %arg4[%c0_15, %c0_16] : memref<1x64xf32, #tpu.memory_space<vmem>>, vector<1x64xf32>
    %40 = vector.broadcast %39 : vector<1x64xf32> to vector<128x64xf32>
    %41 = arith.addf %38, %40 : vector<128x64xf32>
    %c0_17 = arith.constant 0 : index
    %c0_18 = arith.constant 0 : index
    %42 = vector.load %arg5[%c0_17, %c0_18] : memref<128x64xf32, #tpu.memory_space<vmem>>, vector<128x64xf32>
    tpu.vector_store %arg5[%c0_17, %c0_18], %41 {strides = array<i32>} : memref<128x64xf32, #tpu.memory_space<vmem>>, vector<128x64xf32>,
    return
  }
  func.func @transform_0(%arg0: i32) -> (i32, i32, i32, i32) {
    %c0_i32 = arith.constant 0 : i32
    %c0_i32_0 = arith.constant 0 : i32
    %c0_i32_1 = arith.constant 0 : i32
    %c0_i32_2 = arith.constant 0 : i32
    return %arg0, %c0_i32, %c0_i32_0, %c0_i32_1 : i32, i32, i32, i32
  }
  func.func @transform_1(%arg0: i32) -> (i32, i32) {
    %c0_i32 = arith.constant 0 : i32
    %c0_i32_0 = arith.constant 0 : i32
    %c0_i32_1 = arith.constant 0 : i32
    return %c0_i32, %c0_i32_0 : i32, i32
  }
  func.func @transform_2(%arg0: i32) -> (i32, i32) {
    %c0_i32 = arith.constant 0 : i32
    %c0_i32_0 = arith.constant 0 : i32
    %c0_i32_1 = arith.constant 0 : i32
    return %c0_i32, %c0_i32_0 : i32, i32
  }
  func.func @transform_3(%arg0: i32) -> (i32, i32) {
    %c0_i32 = arith.constant 0 : i32
    %c0_i32_0 = arith.constant 0 : i32
    %c0_i32_1 = arith.constant 0 : i32
    return %c0_i32, %c0_i32_0 : i32, i32
  }
  func.func @transform_4(%arg0: i32) -> (i32, i32) {
    %c0_i32 = arith.constant 0 : i32
    %c0_i32_0 = arith.constant 0 : i32
    return %arg0, %c0_i32 : i32, i32
  }
}

module attributes {stable_mosaic.version = 11 : i64} {
  func.func @_fused_kernel(%arg0: i32, %arg1: memref<16x2x8x64xf32, #tpu.memory_space<vmem>>, %arg2: memref<64x64xf32, #tpu.memory_space<vmem>>, %arg3: memref<64x64xf32, #tpu.memory_space<vmem>>, %arg4: memref<1x64xf32, #tpu.memory_space<vmem>>, %arg5: memref<128x64xf32, #tpu.memory_space<vmem>>) attributes {dimension_semantics = [#tpu.dimension_semantics<parallel>], iteration_bounds = array<i64: 1>, scalar_prefetch = 0 : i64, scratch_operands = 0 : i64, tpu.core_type = #tpu.core_type<tc>, window_params = [{transform_indices = @transform_0, window_bounds = array<i64: 16, 2, 8, 64>}, {pipeline_mode = #tpu.pipeline_mode<synchronous>, transform_indices = @transform_1, window_bounds = array<i64: 64, 64>}, {pipeline_mode = #tpu.pipeline_mode<synchronous>, transform_indices = @transform_2, window_bounds = array<i64: 64, 64>}, {pipeline_mode = #tpu.pipeline_mode<synchronous>, transform_indices = @transform_3, window_bounds = array<i64: 1, 64>}, {transform_indices = @transform_4, window_bounds = array<i64: 128, 64>}]} {
    %c0 = arith.constant 0 : index
    %c0_0 = arith.constant 0 : index
    %c0_1 = arith.constant 0 : index
    %c0_2 = arith.constant 0 : index
    %0 = vector.load %arg1[%c0, %c0_0, %c0_1, %c0_2] : memref<16x2x8x64xf32, #tpu.memory_space<vmem>>, vector<16x2x8x64xf32>
    %1 = vector.extract_strided_slice %0 {offsets = [0, 0, 0, 0], sizes = [16, 1, 8, 64], strides = [1, 1, 1, 1]} : vector<16x2x8x64xf32> to vector<16x1x8x64xf32>
    %2 = vector.shape_cast %1 : vector<16x1x8x64xf32> to vector<16x8x64xf32>
    %3 = vector.shape_cast %2 : vector<16x8x64xf32> to vector<128x64xf32>
    %4 = vector.extract_strided_slice %0 {offsets = [0, 1, 0, 0], sizes = [16, 1, 8, 64], strides = [1, 1, 1, 1]} : vector<16x2x8x64xf32> to vector<16x1x8x64xf32>
    %5 = vector.shape_cast %4 : vector<16x1x8x64xf32> to vector<16x8x64xf32>
    %6 = vector.shape_cast %5 : vector<16x8x64xf32> to vector<128x64xf32>
    %cst = arith.constant dense<0.000000e+00> : vector<128xf32>
    %7 = vector.multi_reduction <add>, %3, %cst [1] : vector<128x64xf32> to vector<128xf32>
    %8 = vector.shape_cast %7 : vector<128xf32> to vector<128x1xf32>
    %cst_3 = arith.constant dense<0.000000e+00> : vector<128xf32>
    %9 = vector.multi_reduction <add>, %6, %cst_3 [1] : vector<128x64xf32> to vector<128xf32>
    %10 = vector.shape_cast %9 : vector<128xf32> to vector<128x1xf32>
    %11 = arith.addf %8, %10 : vector<128x1xf32>
    %cst_4 = arith.constant 7.812500e-03 : f32
    %12 = vector.broadcast %cst_4 : f32 to vector<128x1xf32>
    %13 = arith.mulf %11, %12 : vector<128x1xf32>
    %14 = vector.broadcast %13 : vector<128x1xf32> to vector<128x64xf32>
    %15 = arith.subf %3, %14 : vector<128x64xf32>
    %16 = vector.broadcast %13 : vector<128x1xf32> to vector<128x64xf32>
    %17 = arith.subf %6, %16 : vector<128x64xf32>
    %18 = arith.mulf %15, %15 : vector<128x64xf32>
    %cst_5 = arith.constant dense<0.000000e+00> : vector<128xf32>
    %19 = vector.multi_reduction <add>, %18, %cst_5 [1] : vector<128x64xf32> to vector<128xf32>
    %20 = vector.shape_cast %19 : vector<128xf32> to vector<128x1xf32>
    %21 = arith.mulf %17, %17 : vector<128x64xf32>
    %cst_6 = arith.constant dense<0.000000e+00> : vector<128xf32>
    %22 = vector.multi_reduction <add>, %21, %cst_6 [1] : vector<128x64xf32> to vector<128xf32>
    %23 = vector.shape_cast %22 : vector<128xf32> to vector<128x1xf32>
    %24 = arith.addf %20, %23 : vector<128x1xf32>
    %cst_7 = arith.constant 7.812500e-03 : f32
    %25 = vector.broadcast %cst_7 : f32 to vector<128x1xf32>
    %26 = arith.mulf %24, %25 : vector<128x1xf32>
    %cst_8 = arith.constant 9.99999974E-6 : f32
    %27 = vector.broadcast %cst_8 : f32 to vector<128x1xf32>
    %28 = arith.addf %26, %27 : vector<128x1xf32>
    %29 = math.rsqrt %28 : vector<128x1xf32>
    %30 = vector.broadcast %29 : vector<128x1xf32> to vector<128x64xf32>
    %31 = arith.mulf %15, %30 : vector<128x64xf32>
    %32 = vector.broadcast %29 : vector<128x1xf32> to vector<128x64xf32>
    %33 = arith.mulf %17, %32 : vector<128x64xf32>
    %c0_9 = arith.constant 0 : index
    %c0_10 = arith.constant 0 : index
    %34 = vector.load %arg2[%c0_9, %c0_10] : memref<64x64xf32, #tpu.memory_space<vmem>>, vector<64x64xf32>
    %cst_11 = arith.constant dense<0.000000e+00> : vector<128x64xf32>
    %35 = tpu.matmul %31, %34, %cst_11 {dimension_numbers = #tpu.dot_dimension_numbers<[1], [0], [0], [1], [0, 0, 1, 1], [], []>} : vector<128x64xf32>, vector<64x64xf32>, vector<128x64xf32> -> vector<128x64xf32>
    %c0_12 = arith.constant 0 : index
    %c0_13 = arith.constant 0 : index
    %36 = vector.load %arg3[%c0_12, %c0_13] : memref<64x64xf32, #tpu.memory_space<vmem>>, vector<64x64xf32>
    %cst_14 = arith.constant dense<0.000000e+00> : vector<128x64xf32>
    %37 = tpu.matmul %33, %36, %cst_14 {dimension_numbers = #tpu.dot_dimension_numbers<[1], [0], [0], [1], [0, 0, 1, 1], [], []>} : vector<128x64xf32>, vector<64x64xf32>, vector<128x64xf32> -> vector<128x64xf32>
    %38 = arith.addf %35, %37 : vector<128x64xf32>
    %c0_15 = arith.constant 0 : index
    %c0_16 = arith.constant 0 : index
    %39 = vector.load %arg4[%c0_15, %c0_16] : memref<1x64xf32, #tpu.memory_space<vmem>>, vector<1x64xf32>
    %40 = vector.broadcast %39 : vector<1x64xf32> to vector<128x64xf32>
    %41 = arith.addf %38, %40 : vector<128x64xf32>
    %c0_17 = arith.constant 0 : index
    %c0_18 = arith.constant 0 : index
    %42 = vector.load %arg5[%c0_17, %c0_18] : memref<128x64xf32, #tpu.memory_space<vmem>>, vector<128x64xf32>
    tpu.vector_store %arg5[%c0_17, %c0_18], %41 {strides = array<i32>} : memref<128x64xf32, #tpu.memory_space<vmem>>, vector<128x64xf32>,
    return
  }
  func.func @transform_0(%arg0: i32) -> (i32, i32, i32, i32) {
    %c0_i32 = arith.constant 0 : i32
    %c0_i32_0 = arith.constant 0 : i32
    %c0_i32_1 = arith.constant 0 : i32
    %c0_i32_2 = arith.constant 0 : i32
    return %arg0, %c0_i32, %c0_i32_0, %c0_i32_1 : i32, i32, i32, i32
  }
  func.func @transform_1(%arg0: i32) -> (i32, i32) {
    %c0_i32 = arith.constant 0 : i32
    %c0_i32_0 = arith.constant 0 : i32
    %c0_i32_1 = arith.constant 0 : i32
    return %c0_i32, %c0_i32_0 : i32, i32
  }
  func.func @transform_2(%arg0: i32) -> (i32, i32) {
    %c0_i32 = arith.constant 0 : i32
    %c0_i32_0 = arith.constant 0 : i32
    %c0_i32_1 = arith.constant 0 : i32
    return %c0_i32, %c0_i32_0 : i32, i32
  }
  func.func @transform_3(%arg0: i32) -> (i32, i32) {
    %c0_i32 = arith.constant 0 : i32
    %c0_i32_0 = arith.constant 0 : i32
    %c0_i32_1 = arith.constant 0 : i32
    return %c0_i32, %c0_i32_0 : i32, i32
  }
  func.func @transform_4(%arg0: i32) -> (i32, i32) {
    %c0_i32 = arith.constant 0 : i32
    %c0_i32_0 = arith.constant 0 : i32
    return %arg0, %c0_i32 : i32, i32
  }
}

</mosaic_0001>

<llo_original>
// kernel: tpu_custom_call.1
$region0: #{tpu_custom_call.1}
  #allocation0 [shape = 'u32[]', space=smem, size = 0x4, offset = 0x4, fixed_abs, tag = 'smem constant byte address 0x4 - core index']
  #allocation1 [shape = 'u32[144,128]{1,0:T(1,128)}', space=vmem, size = 0x12000, scoped, tag = 'internal scratch']
  %s0 = inlined_call_operand.hbm [shape: f32[16,2,8,64], index: 0, kind: input, shape index: {}]
  %s1 = inlined_call_operand.hbm [shape: f32[64,64], index: 1, kind: input, shape index: {}]
  %s2 = inlined_call_operand.hbm [shape: f32[64,64], index: 2, kind: input, shape index: {}]
  %s3 = inlined_call_operand.vmem [shape: f32[1,64], index: 3, kind: input, shape index: {}]
  %s4 = inlined_call_operand.vmem [shape: f32[128,64], index: 4, kind: output, shape index: {}]
  %s5 = sld [smem:[#allocation0]]
  $region38: #{tpu_custom_call.1} parent=0
    _
  %s7 = ssub.s32 1, %s5
  %s8 = scalar_select 0, %s7, %s5
  $region1: #{tpu_custom_call.1} parent=0
    #allocation2 [shape = 'u8[131072]{0}', space=vmem, size = 0x20000, scoped, tag = 'input window, operand 0, single buffered']
    #allocation3 [shape = 's32[1]{0}', space=sflag, size = 0x4, scoped, tag = 'scoped memory for tpu_custom_call.1']
    #allocation4 [shape = 'u8[32768]{0}', space=vmem, size = 0x8000, scoped, tag = 'input window, operand 1, single buffered']
    #allocation5 [shape = 's32[1]{0}', space=sflag, size = 0x4, scoped, tag = 'scoped memory for tpu_custom_call.1']
    #allocation6 [shape = 'u8[32768]{0}', space=vmem, size = 0x8000, scoped, tag = 'input window, operand 2, single buffered']
    %9 = vsyncpa [#allocation3], 0
    %10 = vsyncpa [#allocation5], 0
    // Predicated region
    $region2: #{tpu_custom_call.1} parent=1 // pred_check
      _
    $region3: #{tpu_custom_call.1} parent=1 // pred_check_branch
      %12 = sbr.rel (0) target = $region5
    $region4: #{tpu_custom_call.1} parent=1 // pred_region
      %s14 = ssub.s32 4096, 4096
      %15 = vsyncadd [#allocation3], %s14
      %s16 = sshll.u32 [#allocation2], 4
      %s17 = int_to_ptr.vmem [resolvable:$true] %s16
      %22 = dma.hbm_to_vmem [thread:$0]  %s0, 4096, %s17, [#allocation3], 128, 128, 8
    $region5: #{tpu_custom_call.1} parent=1 // pred_fallthru
      _
    // Predicated region
    $region6: #{tpu_custom_call.1} parent=1 // pred_check
      _
    $region7: #{tpu_custom_call.1} parent=1 // pred_check_branch
      %24 = sbr.rel (0) target = $region9
    $region8: #{tpu_custom_call.1} parent=1 // pred_region
      %s26 = ssub.s32 1024, 1024
      %27 = vsyncadd [#allocation5], %s26
      %s28 = sshll.u32 [#allocation4], 4
      %s29 = int_to_ptr.vmem [resolvable:$true] %s28
      %34 = dma.hbm_to_vmem [thread:$0]  %s1, 1024, %s29, [#allocation5], 128, 128, 8
    $region9: #{tpu_custom_call.1} parent=1 // pred_fallthru
      _
    // Predicated region
    $region10: #{tpu_custom_call.1} parent=1 // pred_check
      _
    $region11: #{tpu_custom_call.1} parent=1 // pred_check_branch
      %36 = sbr.rel (0) target = $region13
    $region12: #{tpu_custom_call.1} parent=1 // pred_region
      %s38 = ssub.s32 1024, 1024
      %39 = vsyncadd [#allocation5], %s38
      %s40 = sshll.u32 [#allocation6], 4
      %s41 = int_to_ptr.vmem [resolvable:$true] %s40
      %46 = dma.hbm_to_vmem [thread:$0]  %s2, 1024, %s41, [#allocation5], 128, 128, 8
    $region13: #{tpu_custom_call.1} parent=1 // pred_fallthru
      _
    // Predicated region
    $region14: #{tpu_custom_call.1} parent=1 // pred_check
      _
    $region15: #{tpu_custom_call.1} parent=1 // pred_check_branch
      %48 = sbr.rel (0) target = $region17
    $region16: #{tpu_custom_call.1} parent=1 // pred_region
      _
    $region17: #{tpu_custom_call.1} parent=1 // pred_fallthru
      _
    // Predicated region
    $region18: #{tpu_custom_call.1} parent=1 // pred_check
      _
    $region19: #{tpu_custom_call.1} parent=1 // pred_check_branch
      %50 = sbr.rel (0) target = $region21
    $region20: #{tpu_custom_call.1} parent=1 // pred_region
      %51 = dma.done [#allocation3], 4096
    $region21: #{tpu_custom_call.1} parent=1 // pred_fallthru
      _
    // Predicated region
    $region22: #{tpu_custom_call.1} parent=1 // pred_check
      _
    $region23: #{tpu_custom_call.1} parent=1 // pred_check_branch
      %53 = sbr.rel (0) target = $region25
    $region24: #{tpu_custom_call.1} parent=1 // pred_region
      %54 = dma.done [#allocation5], 1024
    $region25: #{tpu_custom_call.1} parent=1 // pred_fallthru
      _
    // Predicated region
    $region26: #{tpu_custom_call.1} parent=1 // pred_check
      _
    $region27: #{tpu_custom_call.1} parent=1 // pred_check_branch
      %56 = sbr.rel (0) target = $region29
    $region28: #{tpu_custom_call.1} parent=1 // pred_region
      %57 = dma.done [#allocation5], 1024
    $region29: #{tpu_custom_call.1} parent=1 // pred_fallthru
      _
    %v58 = vld [vmem:[#allocation2] sm:$0xff]
    %v59 = vld [vmem:[#allocation2 + $0x8] sm:$0xff]
    %v60 = vld [vmem:[#allocation2 + $0x10] sm:$0xff]
    %v61 = vld [vmem:[#allocation2 + $0x18] sm:$0xff]
    %v62 = vld [vmem:[#allocation2 + $0x20] sm:$0xff]
    %v63 = vld [vmem:[#allocation2 + $0x28] sm:$0xff]
    %v64 = vld [vmem:[#allocation2 + $0x30] sm:$0xff]
    %v65 = vld [vmem:[#allocation2 + $0x38] sm:$0xff]
    %v66 = vld [vmem:[#allocation2 + $0x40] sm:$0xff]
    %v67 = vld [vmem:[#allocation2 + $0x48] sm:$0xff]
    %v68 = vld [vmem:[#allocation2 + $0x50] sm:$0xff]
    %v69 = vld [vmem:[#allocation2 + $0x58] sm:$0xff]
    %v70 = vld [vmem:[#allocation2 + $0x60] sm:$0xff]
    %v71 = vld [vmem:[#allocation2 + $0x68] sm:$0xff]
    %v72 = vld [vmem:[#allocation2 + $0x70] sm:$0xff]
    %v73 = vld [vmem:[#allocation2 + $0x78] sm:$0xff]
    %v74 = vld [vmem:[#allocation2 + $0x80] sm:$0xff]
    %v75 = vld [vmem:[#allocation2 + $0x88] sm:$0xff]
    %v76 = vld [vmem:[#allocation2 + $0x90] sm:$0xff]
    %v77 = vld [vmem:[#allocation2 + $0x98] sm:$0xff]
    %v78 = vld [vmem:[#allocation2 + $0xa0] sm:$0xff]
    %v79 = vld [vmem:[#allocation2 + $0xa8] sm:$0xff]
    %v80 = vld [vmem:[#allocation2 + $0xb0] sm:$0xff]
    %v81 = vld [vmem:[#allocation2 + $0xb8] sm:$0xff]
    %v82 = vld [vmem:[#allocation2 + $0xc0] sm:$0xff]
    %v83 = vld [vmem:[#allocation2 + $0xc8] sm:$0xff]
    %v84 = vld [vmem:[#allocation2 + $0xd0] sm:$0xff]
    %v85 = vld [vmem:[#allocation2 + $0xd8] sm:$0xff]
    %v86 = vld [vmem:[#allocation2 + $0xe0] sm:$0xff]
    %v87 = vld [vmem:[#allocation2 + $0xe8] sm:$0xff]
    %v88 = vld [vmem:[#allocation2 + $0xf0] sm:$0xff]
    %v89 = vld [vmem:[#allocation2 + $0xf8] sm:$0xff]
    %vm90 = vcmask 523264
    %v91 = vsel %vm90, %v58, 0.0
    %92 = vadd.xlane.f32.xlu0 %v91
    %v93 = vpop.xlane.xlu0 %92
    %v94 = vsel %vm90, %v60, 0.0
    %95 = vadd.xlane.f32.xlu0 %v94
    %v96 = vpop.xlane.xlu0 %95
    %v97 = vsel %vm90, %v62, 0.0
    %98 = vadd.xlane.f32.xlu0 %v97
    %v99 = vpop.xlane.xlu0 %98
    %v100 = vsel %vm90, %v64, 0.0
    %101 = vadd.xlane.f32.xlu0 %v100
    %v102 = vpop.xlane.xlu0 %101
    %v103 = vsel %vm90, %v66, 0.0
    %104 = vadd.xlane.f32.xlu0 %v103
    %v105 = vpop.xlane.xlu0 %104
    %v106 = vsel %vm90, %v68, 0.0
    %107 = vadd.xlane.f32.xlu0 %v106
    %v108 = vpop.xlane.xlu0 %107
    %v109 = vsel %vm90, %v70, 0.0
    %110 = vadd.xlane.f32.xlu0 %v109
    %v111 = vpop.xlane.xlu0 %110
    %v112 = vsel %vm90, %v72, 0.0
    %113 = vadd.xlane.f32.xlu0 %v112
    %v114 = vpop.xlane.xlu0 %113
    %v115 = vsel %vm90, %v74, 0.0
    %116 = vadd.xlane.f32.xlu0 %v115
    %v117 = vpop.xlane.xlu0 %116
    %v118 = vsel %vm90, %v76, 0.0
    %119 = vadd.xlane.f32.xlu0 %v118
    %v120 = vpop.xlane.xlu0 %119
    %v121 = vsel %vm90, %v78, 0.0
    %122 = vadd.xlane.f32.xlu0 %v121
    %v123 = vpop.xlane.xlu0 %122
    %v124 = vsel %vm90, %v80, 0.0
    %125 = vadd.xlane.f32.xlu0 %v124
    %v126 = vpop.xlane.xlu0 %125
    %v127 = vsel %vm90, %v82, 0.0
    %128 = vadd.xlane.f32.xlu0 %v127
    %v129 = vpop.xlane.xlu0 %128
    %v130 = vsel %vm90, %v84, 0.0
    %131 = vadd.xlane.f32.xlu0 %v130
    %v132 = vpop.xlane.xlu0 %131
    %v133 = vsel %vm90, %v86, 0.0
    %134 = vadd.xlane.f32.xlu0 %v133
    %v135 = vpop.xlane.xlu0 %134
    %v136 = vsel %vm90, %v88, 0.0
    %137 = vadd.xlane.f32.xlu0 %v136
    %v138 = vpop.xlane.xlu0 %137
    %v139 = vsel %vm90, %v59, 0.0
    %140 = vadd.xlane.f32.xlu0 %v139
    %v141 = vpop.xlane.xlu0 %140
    %v142 = vsel %vm90, %v61, 0.0
    %143 = vadd.xlane.f32.xlu0 %v142
    %v144 = vpop.xlane.xlu0 %143
    %v145 = vsel %vm90, %v63, 0.0
    %146 = vadd.xlane.f32.xlu0 %v145
    %v147 = vpop.xlane.xlu0 %146
    %v148 = vsel %vm90, %v65, 0.0
    %149 = vadd.xlane.f32.xlu0 %v148
    %v150 = vpop.xlane.xlu0 %149
    %v151 = vsel %vm90, %v67, 0.0
    %152 = vadd.xlane.f32.xlu0 %v151
    %v153 = vpop.xlane.xlu0 %152
    %v154 = vsel %vm90, %v69, 0.0
    %155 = vadd.xlane.f32.xlu0 %v154
    %v156 = vpop.xlane.xlu0 %155
    %v157 = vsel %vm90, %v71, 0.0
    %158 = vadd.xlane.f32.xlu0 %v157
    %v159 = vpop.xlane.xlu0 %158
    %v160 = vsel %vm90, %v73, 0.0
    %161 = vadd.xlane.f32.xlu0 %v160
    %v162 = vpop.xlane.xlu0 %161
    %v163 = vsel %vm90, %v75, 0.0
    %164 = vadd.xlane.f32.xlu0 %v163
    %v165 = vpop.xlane.xlu0 %164
    %v166 = vsel %vm90, %v77, 0.0
    %167 = vadd.xlane.f32.xlu0 %v166
    %v168 = vpop.xlane.xlu0 %167
    %v169 = vsel %vm90, %v79, 0.0
    %170 = vadd.xlane.f32.xlu0 %v169
    %v171 = vpop.xlane.xlu0 %170
    %v172 = vsel %vm90, %v81, 0.0
    %173 = vadd.xlane.f32.xlu0 %v172
    %v174 = vpop.xlane.xlu0 %173
    %v175 = vsel %vm90, %v83, 0.0
    %176 = vadd.xlane.f32.xlu0 %v175
    %v177 = vpop.xlane.xlu0 %176
    %v178 = vsel %vm90, %v85, 0.0
    %179 = vadd.xlane.f32.xlu0 %v178
    %v180 = vpop.xlane.xlu0 %179
    %v181 = vsel %vm90, %v87, 0.0
    %182 = vadd.xlane.f32.xlu0 %v181
    %v183 = vpop.xlane.xlu0 %182
    %v184 = vsel %vm90, %v89, 0.0
    %185 = vadd.xlane.f32.xlu0 %v184
    %v186 = vpop.xlane.xlu0 %185
    %v187 = vadd.f32 %v93, %v141
    %v188 = vadd.f32 %v96, %v144
    %v189 = vadd.f32 %v99, %v147
    %v190 = vadd.f32 %v102, %v150
    %v191 = vadd.f32 %v105, %v153
    %v192 = vadd.f32 %v108, %v156
    %v193 = vadd.f32 %v111, %v159
    %v194 = vadd.f32 %v114, %v162
    %v195 = vadd.f32 %v117, %v165
    %v196 = vadd.f32 %v120, %v168
    %v197 = vadd.f32 %v123, %v171
    %v198 = vadd.f32 %v126, %v174
    %v199 = vadd.f32 %v129, %v177
    %v200 = vadd.f32 %v132, %v180
    %v201 = vadd.f32 %v135, %v183
    %v202 = vadd.f32 %v138, %v186
    %v203 = vmul.f32 %v187, 0.0078125
    %v204 = vmul.f32 %v188, 0.0078125
    %v205 = vmul.f32 %v189, 0.0078125
    %v206 = vmul.f32 %v190, 0.0078125
    %v207 = vmul.f32 %v191, 0.0078125
    %v208 = vmul.f32 %v192, 0.0078125
    %v209 = vmul.f32 %v193, 0.0078125
    %v210 = vmul.f32 %v194, 0.0078125
    %v211 = vmul.f32 %v195, 0.0078125
    %v212 = vmul.f32 %v196, 0.0078125
    %v213 = vmul.f32 %v197, 0.0078125
    %v214 = vmul.f32 %v198, 0.0078125
    %v215 = vmul.f32 %v199, 0.0078125
    %v216 = vmul.f32 %v200, 0.0078125
    %v217 = vmul.f32 %v201, 0.0078125
    %v218 = vmul.f32 %v202, 0.0078125
    %v219 = vsub.f32 %v58, %v203
    %v220 = vsub.f32 %v60, %v204
    %v221 = vsub.f32 %v62, %v205
    %v222 = vsub.f32 %v64, %v206
    %v223 = vsub.f32 %v66, %v207
    %v224 = vsub.f32 %v68, %v208
    %v225 = vsub.f32 %v70, %v209
    %v226 = vsub.f32 %v72, %v210
    %v227 = vsub.f32 %v74, %v211
    %v228 = vsub.f32 %v76, %v212
    %v229 = vsub.f32 %v78, %v213
    %v230 = vsub.f32 %v80, %v214
    %v231 = vsub.f32 %v82, %v215
    %v232 = vsub.f32 %v84, %v216
    %v233 = vsub.f32 %v86, %v217
    %v234 = vsub.f32 %v88, %v218
    %v235 = vsub.f32 %v59, %v203
    %v236 = vsub.f32 %v61, %v204
    %v237 = vsub.f32 %v63, %v205
    %v238 = vsub.f32 %v65, %v206
    %v239 = vsub.f32 %v67, %v207
    %v240 = vsub.f32 %v69, %v208
    %v241 = vsub.f32 %v71, %v209
    %v242 = vsub.f32 %v73, %v210
    %v243 = vsub.f32 %v75, %v211
    %v244 = vsub.f32 %v77, %v212
    %v245 = vsub.f32 %v79, %v213
    %v246 = vsub.f32 %v81, %v214
    %v247 = vsub.f32 %v83, %v215
    %v248 = vsub.f32 %v85, %v216
    %v249 = vsub.f32 %v87, %v217
    %v250 = vsub.f32 %v89, %v218
    %v251 = vmul.f32 %v219, %v219
    %v252 = vmul.f32 %v220, %v220
    %v253 = vmul.f32 %v221, %v221
    %v254 = vmul.f32 %v222, %v222
    %v255 = vmul.f32 %v223, %v223
    %v256 = vmul.f32 %v224, %v224
    %v257 = vmul.f32 %v225, %v225
    %v258 = vmul.f32 %v226, %v226
    %v259 = vmul.f32 %v227, %v227
    %v260 = vmul.f32 %v228, %v228
    %v261 = vmul.f32 %v229, %v229
    %v262 = vmul.f32 %v230, %v230
    %v263 = vmul.f32 %v231, %v231
    %v264 = vmul.f32 %v232, %v232
    %v265 = vmul.f32 %v233, %v233
    %v266 = vmul.f32 %v234, %v234
    %v267 = vsel %vm90, %v251, 0.0
    %268 = vadd.xlane.f32.xlu0 %v267
    %v269 = vpop.xlane.xlu0 %268
    %v270 = vsel %vm90, %v252, 0.0
    %271 = vadd.xlane.f32.xlu0 %v270
    %v272 = vpop.xlane.xlu0 %271
    %v273 = vsel %vm90, %v253, 0.0
    %274 = vadd.xlane.f32.xlu0 %v273
    %v275 = vpop.xlane.xlu0 %274
    %v276 = vsel %vm90, %v254, 0.0
    %277 = vadd.xlane.f32.xlu0 %v276
    %v278 = vpop.xlane.xlu0 %277
    %v279 = vsel %vm90, %v255, 0.0
    %280 = vadd.xlane.f32.xlu0 %v279
    %v281 = vpop.xlane.xlu0 %280
    %v282 = vsel %vm90, %v256, 0.0
    %283 = vadd.xlane.f32.xlu0 %v282
    %v284 = vpop.xlane.xlu0 %283
    %v285 = vsel %vm90, %v257, 0.0
    %286 = vadd.xlane.f32.xlu0 %v285
    %v287 = vpop.xlane.xlu0 %286
    %v288 = vsel %vm90, %v258, 0.0
    %289 = vadd.xlane.f32.xlu0 %v288
    %v290 = vpop.xlane.xlu0 %289
    %v291 = vsel %vm90, %v259, 0.0
    %292 = vadd.xlane.f32.xlu0 %v291
    %v293 = vpop.xlane.xlu0 %292
    %v294 = vsel %vm90, %v260, 0.0
    %295 = vadd.xlane.f32.xlu0 %v294
    %v296 = vpop.xlane.xlu0 %295
    %v297 = vsel %vm90, %v261, 0.0
    %298 = vadd.xlane.f32.xlu0 %v297
    %v299 = vpop.xlane.xlu0 %298
    %v300 = vsel %vm90, %v262, 0.0
    %301 = vadd.xlane.f32.xlu0 %v300
    %v302 = vpop.xlane.xlu0 %301
    %v303 = vsel %vm90, %v263, 0.0
    %304 = vadd.xlane.f32.xlu0 %v303
    %v305 = vpop.xlane.xlu0 %304
    %v306 = vsel %vm90, %v264, 0.0
    %307 = vadd.xlane.f32.xlu0 %v306
    %v308 = vpop.xlane.xlu0 %307
    %v309 = vsel %vm90, %v265, 0.0
    %310 = vadd.xlane.f32.xlu0 %v309
    %v311 = vpop.xlane.xlu0 %310
    %v312 = vsel %vm90, %v266, 0.0
    %313 = vadd.xlane.f32.xlu0 %v312
    %v314 = vpop.xlane.xlu0 %313
    %v315 = vmul.f32 %v235, %v235
    %v316 = vmul.f32 %v236, %v236
    %v317 = vmul.f32 %v237, %v237
    %v318 = vmul.f32 %v238, %v238
    %v319 = vmul.f32 %v239, %v239
    %v320 = vmul.f32 %v240, %v240
    %v321 = vmul.f32 %v241, %v241
    %v322 = vmul.f32 %v242, %v242
    %v323 = vmul.f32 %v243, %v243
    %v324 = vmul.f32 %v244, %v244
    %v325 = vmul.f32 %v245, %v245
    %v326 = vmul.f32 %v246, %v246
    %v327 = vmul.f32 %v247, %v247
    %v328 = vmul.f32 %v248, %v248
    %v329 = vmul.f32 %v249, %v249
    %v330 = vmul.f32 %v250, %v250
    %v331 = vsel %vm90, %v315, 0.0
    %332 = vadd.xlane.f32.xlu0 %v331
    %v333 = vpop.xlane.xlu0 %332
    %v334 = vsel %vm90, %v316, 0.0
    %335 = vadd.xlane.f32.xlu0 %v334
    %v336 = vpop.xlane.xlu0 %335
    %v337 = vsel %vm90, %v317, 0.0
    %338 = vadd.xlane.f32.xlu0 %v337
    %v339 = vpop.xlane.xlu0 %338
    %v340 = vsel %vm90, %v318, 0.0
    %341 = vadd.xlane.f32.xlu0 %v340
    %v342 = vpop.xlane.xlu0 %341
    %v343 = vsel %vm90, %v319, 0.0
    %344 = vadd.xlane.f32.xlu0 %v343
    %v345 = vpop.xlane.xlu0 %344
    %v346 = vsel %vm90, %v320, 0.0
    %347 = vadd.xlane.f32.xlu0 %v346
    %v348 = vpop.xlane.xlu0 %347
    %v349 = vsel %vm90, %v321, 0.0
    %350 = vadd.xlane.f32.xlu0 %v349
    %v351 = vpop.xlane.xlu0 %350
    %v352 = vsel %vm90, %v322, 0.0
    %353 = vadd.xlane.f32.xlu0 %v352
    %v354 = vpop.xlane.xlu0 %353
    %v355 = vsel %vm90, %v323, 0.0
    %356 = vadd.xlane.f32.xlu0 %v355
    %v357 = vpop.xlane.xlu0 %356
    %v358 = vsel %vm90, %v324, 0.0
    %359 = vadd.xlane.f32.xlu0 %v358
    %v360 = vpop.xlane.xlu0 %359
    %v361 = vsel %vm90, %v325, 0.0
    %362 = vadd.xlane.f32.xlu0 %v361
    %v363 = vpop.xlane.xlu0 %362
    %v364 = vsel %vm90, %v326, 0.0
    %365 = vadd.xlane.f32.xlu0 %v364
    %v366 = vpop.xlane.xlu0 %365
    %v367 = vsel %vm90, %v327, 0.0
    %368 = vadd.xlane.f32.xlu0 %v367
    %v369 = vpop.xlane.xlu0 %368
    %v370 = vsel %vm90, %v328, 0.0
    %371 = vadd.xlane.f32.xlu0 %v370
    %v372 = vpop.xlane.xlu0 %371
    %v373 = vsel %vm90, %v329, 0.0
    %374 = vadd.xlane.f32.xlu0 %v373
    %v375 = vpop.xlane.xlu0 %374
    %v376 = vsel %vm90, %v330, 0.0
    %377 = vadd.xlane.f32.xlu0 %v376
    %v378 = vpop.xlane.xlu0 %377
    %v379 = vadd.f32 %v269, %v333
    %v380 = vadd.f32 %v272, %v336
    %v381 = vadd.f32 %v275, %v339
    %v382 = vadd.f32 %v278, %v342
    %v383 = vadd.f32 %v281, %v345
    %v384 = vadd.f32 %v284, %v348
    %v385 = vadd.f32 %v287, %v351
    %v386 = vadd.f32 %v290, %v354
    %v387 = vadd.f32 %v293, %v357
    %v388 = vadd.f32 %v296, %v360
    %v389 = vadd.f32 %v299, %v363
    %v390 = vadd.f32 %v302, %v366
    %v391 = vadd.f32 %v305, %v369
    %v392 = vadd.f32 %v308, %v372
    %v393 = vadd.f32 %v311, %v375
    %v394 = vadd.f32 %v314, %v378
    %v395 = vmul.f32 %v379, 0.0078125
    %v396 = vmul.f32 %v380, 0.0078125
    %v397 = vmul.f32 %v381, 0.0078125
    %v398 = vmul.f32 %v382, 0.0078125
    %v399 = vmul.f32 %v383, 0.0078125
    %v400 = vmul.f32 %v384, 0.0078125
    %v401 = vmul.f32 %v385, 0.0078125
    %v402 = vmul.f32 %v386, 0.0078125
    %v403 = vmul.f32 %v387, 0.0078125
    %v404 = vmul.f32 %v388, 0.0078125
    %v405 = vmul.f32 %v389, 0.0078125
    %v406 = vmul.f32 %v390, 0.0078125
    %v407 = vmul.f32 %v391, 0.0078125
    %v408 = vmul.f32 %v392, 0.0078125
    %v409 = vmul.f32 %v393, 0.0078125
    %v410 = vmul.f32 %v394, 0.0078125
    %v411 = vadd.f32 %v395, 1e-05
    %v412 = vadd.f32 %v396, 1e-05
    %v413 = vadd.f32 %v397, 1e-05
    %v414 = vadd.f32 %v398, 1e-05
    %v415 = vadd.f32 %v399, 1e-05
    %v416 = vadd.f32 %v400, 1e-05
    %v417 = vadd.f32 %v401, 1e-05
    %v418 = vadd.f32 %v402, 1e-05
    %v419 = vadd.f32 %v403, 1e-05
    %v420 = vadd.f32 %v404, 1e-05
    %v421 = vadd.f32 %v405, 1e-05
    %v422 = vadd.f32 %v406, 1e-05
    %v423 = vadd.f32 %v407, 1e-05
    %v424 = vadd.f32 %v408, 1e-05
    %v425 = vadd.f32 %v409, 1e-05
    %v426 = vadd.f32 %v410, 1e-05
    %v427 = vrsqrt.pop %v411
    %v428 = vrsqrt.pop %v412
    %v429 = vrsqrt.pop %v413
    %v430 = vrsqrt.pop %v414
    %v431 = vrsqrt.pop %v415
    %v432 = vrsqrt.pop %v416
    %v433 = vrsqrt.pop %v417
    %v434 = vrsqrt.pop %v418
    %v435 = vrsqrt.pop %v419
    %v436 = vrsqrt.pop %v420
    %v437 = vrsqrt.pop %v421
    %v438 = vrsqrt.pop %v422
    %v439 = vrsqrt.pop %v423
    %v440 = vrsqrt.pop %v424
    %v441 = vrsqrt.pop %v425
    %v442 = vrsqrt.pop %v426
    %v443 = vmul.f32 %v219, %v427
    %v444 = vmul.f32 %v220, %v428
    %v445 = vmul.f32 %v221, %v429
    %v446 = vmul.f32 %v222, %v430
    %v447 = vmul.f32 %v223, %v431
    %v448 = vmul.f32 %v224, %v432
    %v449 = vmul.f32 %v225, %v433
    %v450 = vmul.f32 %v226, %v434
    %v451 = vmul.f32 %v227, %v435
    %v452 = vmul.f32 %v228, %v436
    %v453 = vmul.f32 %v229, %v437
    %v454 = vmul.f32 %v230, %v438
    %v455 = vmul.f32 %v231, %v439
    %v456 = vmul.f32 %v232, %v440
    %v457 = vmul.f32 %v233, %v441
    %v458 = vmul.f32 %v234, %v442
    %v459 = vmul.f32 %v235, %v427
    %v460 = vmul.f32 %v236, %v428
    %v461 = vmul.f32 %v237, %v429
    %v462 = vmul.f32 %v238, %v430
    %v463 = vmul.f32 %v239, %v431
    %v464 = vmul.f32 %v240, %v432
    %v465 = vmul.f32 %v241, %v433
    %v466 = vmul.f32 %v242, %v434
    %v467 = vmul.f32 %v243, %v435
    %v468 = vmul.f32 %v244, %v436
    %v469 = vmul.f32 %v245, %v437
    %v470 = vmul.f32 %v246, %v438
    %v471 = vmul.f32 %v247, %v439
    %v472 = vmul.f32 %v248, %v440
    %v473 = vmul.f32 %v249, %v441
    %v474 = vmul.f32 %v250, %v442
    %v475 = vld [vmem:[#allocation4] sm:$0xff]
    %v476 = vld [vmem:[#allocation4 + $0x8] sm:$0xff]
    %v477 = vld [vmem:[#allocation4 + $0x10] sm:$0xff]
    %v478 = vld [vmem:[#allocation4 + $0x18] sm:$0xff]
    %v479 = vld [vmem:[#allocation4 + $0x20] sm:$0xff]
    %v480 = vld [vmem:[#allocation4 + $0x28] sm:$0xff]
    %v481 = vld [vmem:[#allocation4 + $0x30] sm:$0xff]
    %v482 = vld [vmem:[#allocation4 + $0x38] sm:$0xff]
    %v483 = vld [vmem:[#allocation6] sm:$0xff]
    %v484 = vld [vmem:[#allocation6 + $0x8] sm:$0xff]
    %v485 = vld [vmem:[#allocation6 + $0x10] sm:$0xff]
    %v486 = vld [vmem:[#allocation6 + $0x18] sm:$0xff]
    %v487 = vld [vmem:[#allocation6 + $0x20] sm:$0xff]
    %v488 = vld [vmem:[#allocation6 + $0x28] sm:$0xff]
    %v489 = vld [vmem:[#allocation6 + $0x30] sm:$0xff]
    %v490 = vld [vmem:[#allocation6 + $0x38] sm:$0xff]
    %v492 = vsel %vm90, %v459, 0
    %v495 = vsel %vm90, %v460, 0
    %v498 = vsel %vm90, %v461, 0
    %v501 = vsel %vm90, %v462, 0
    %v504 = vsel %vm90, %v463, 0
    %v507 = vsel %vm90, %v464, 0
    %v510 = vsel %vm90, %v465, 0
    %v513 = vsel %vm90, %v466, 0
    %v516 = vsel %vm90, %v467, 0
    %v519 = vsel %vm90, %v468, 0
    %v522 = vsel %vm90, %v469, 0
    %v525 = vsel %vm90, %v470, 0
    %v528 = vsel %vm90, %v471, 0
    %v531 = vsel %vm90, %v472, 0
    %v534 = vsel %vm90, %v473, 0
    %v537 = vsel %vm90, %v474, 0
    %539 = vmatprep.subr.mxu0 0.0
    %540 = vmatpush1.msra.mxu0 %v483
    %541 = vmatprep.subr.mxu0 0.0
    %542 = vmatpush1.msra.mxu0 %v484
    %543 = vmatprep.subr.mxu0 0.0
    %544 = vmatpush1.msra.mxu0 %v485
    %545 = vmatprep.subr.mxu0 0.0
    %546 = vmatpush1.msra.mxu0 %v486
    %547 = vmatprep.subr.mxu0 0.0
    %548 = vmatpush1.msra.mxu0 %v487
    %549 = vmatprep.subr.mxu0 0.0
    %550 = vmatpush1.msra.mxu0 %v488
    %551 = vmatprep.subr.mxu0 0.0
    %552 = vmatpush1.msra.mxu0 %v489
    %553 = vmatprep.subr.mxu0 0.0
    %554 = vmatpush1.msra.mxu0 %v490
    %555 = vmatprep.subr.mxu0 0.0
    %556 = vmatpush1.msra.mxu0 0.0
    %557 = vmatprep.subr.mxu0 0.0
    %558 = vmatpush1.msra.mxu0 0.0
    %559 = vmatprep.subr.mxu0 0.0
    %560 = vmatpush1.msra.mxu0 0.0
    %561 = vmatprep.subr.mxu0 0.0
    %562 = vmatpush1.msra.mxu0 0.0
    %563 = vmatprep.subr.mxu0 0.0
    %564 = vmatpush1.msra.mxu0 0.0
    %565 = vmatprep.subr.mxu0 0.0
    %566 = vmatpush1.msra.mxu0 0.0
    %567 = vmatprep.subr.mxu0 0.0
    %568 = vmatpush1.msra.mxu0 0.0
    %569 = vmatprep.subr.mxu0 0.0
    %570 = vmatpush1.msra.mxu0 0.0
    %571 = vmatprep.subr.mxu0 0.0
    %572 = vmatpush1.msra.mxu0 0.0
    %573 = vmatprep.subr.mxu0 0.0
    %574 = vmatpush1.msra.mxu0 0.0
    %575 = vmatprep.subr.mxu0 0.0
    %576 = vmatpush1.msra.mxu0 0.0
    %577 = vmatprep.subr.mxu0 0.0
    %578 = vmatpush1.msra.mxu0 0.0
    %579 = vmatprep.subr.mxu0 0.0
    %580 = vmatpush1.msra.mxu0 0.0
    %581 = vmatprep.subr.mxu0 0.0
    %582 = vmatpush1.msra.mxu0 0.0
    %583 = vmatprep.subr.mxu0 0.0
    %584 = vmatpush1.msra.mxu0 0.0
    %585 = vmatprep.subr.mxu0 0.0
    %586 = vmatpush1.msra.mxu0 0.0
    %587 = vmatprep.subr.mxu0 0.0
    %588 = vmatpush1.msra.mxu0 0.0
    %589 = vmatprep.subr.mxu0 0.0
    %590 = vmatpush1.msra.mxu0 0.0
    %591 = vmatprep.subr.mxu0 0.0
    %592 = vmatpush1.msra.mxu0 0.0
    %593 = vmatprep.subr.mxu0 0.0
    %594 = vmatpush1.msra.mxu0 0.0
    %595 = vmatprep.subr.mxu0 0.0
    %596 = vmatpush1.msra.mxu0 0.0
    %597 = vmatprep.subr.mxu0 0.0
    %598 = vmatpush1.msra.mxu0 0.0
    %599 = vmatprep.subr.mxu0 0.0
    %600 = vmatpush1.msra.mxu0 0.0
    %601 = vmatprep.subr.mxu0 0.0
    %602 = vmatpush1.msra.mxu0 0.0
    %603 = vmatprep.mubr.f32.mxu0 0.0
    %604 = vmatmul.mubr.f32.gmra.mrb[0].mxu0 %v492
    %v605 = vpop.f32.mrb[0].mxu0
    %v606 = vadd.f32 0.0, %v605
    %v607 = vpop.f32.mrb[0].mxu0
    %608 = vmatprep.mubr.f32.mxu0 0.0
    %609 = vmatmul.mubr.f32.gmra.mrb[0].mxu0 %v495
    %v610 = vpop.f32.mrb[0].mxu0
    %v611 = vadd.f32 0.0, %v610
    %v612 = vpop.f32.mrb[0].mxu0
    %613 = vmatprep.mubr.f32.mxu0 0.0
    %614 = vmatmul.mubr.f32.gmra.mrb[0].mxu0 %v498
    %v615 = vpop.f32.mrb[0].mxu0
    %v616 = vadd.f32 0.0, %v615
    %v617 = vpop.f32.mrb[0].mxu0
    %618 = vmatprep.mubr.f32.mxu0 0.0
    %619 = vmatmul.mubr.f32.gmra.mrb[0].mxu0 %v501
    %v620 = vpop.f32.mrb[0].mxu0
    %v621 = vadd.f32 0.0, %v620
    %v622 = vpop.f32.mrb[0].mxu0
    %623 = vmatprep.mubr.f32.mxu0 0.0
    %624 = vmatmul.mubr.f32.gmra.mrb[0].mxu0 %v504
    %v625 = vpop.f32.mrb[0].mxu0
    %v626 = vadd.f32 0.0, %v625
    %v627 = vpop.f32.mrb[0].mxu0
    %628 = vmatprep.mubr.f32.mxu0 0.0
    %629 = vmatmul.mubr.f32.gmra.mrb[0].mxu0 %v507
    %v630 = vpop.f32.mrb[0].mxu0
    %v631 = vadd.f32 0.0, %v630
    %v632 = vpop.f32.mrb[0].mxu0
    %633 = vmatprep.mubr.f32.mxu0 0.0
    %634 = vmatmul.mubr.f32.gmra.mrb[0].mxu0 %v510
    %v635 = vpop.f32.mrb[0].mxu0
    %v636 = vadd.f32 0.0, %v635
    %v637 = vpop.f32.mrb[0].mxu0
    %638 = vmatprep.mubr.f32.mxu0 0.0
    %639 = vmatmul.mubr.f32.gmra.mrb[0].mxu0 %v513
    %v640 = vpop.f32.mrb[0].mxu0
    %v641 = vadd.f32 0.0, %v640
    %v642 = vpop.f32.mrb[0].mxu0
    %643 = vmatprep.mubr.f32.mxu0 0.0
    %644 = vmatmul.mubr.f32.gmra.mrb[0].mxu0 %v516
    %v645 = vpop.f32.mrb[0].mxu0
    %v646 = vadd.f32 0.0, %v645
    %v647 = vpop.f32.mrb[0].mxu0
    %648 = vmatprep.mubr.f32.mxu0 0.0
    %649 = vmatmul.mubr.f32.gmra.mrb[0].mxu0 %v519
    %v650 = vpop.f32.mrb[0].mxu0
    %v651 = vadd.f32 0.0, %v650
    %v652 = vpop.f32.mrb[0].mxu0
    %653 = vmatprep.mubr.f32.mxu0 0.0
    %654 = vmatmul.mubr.f32.gmra.mrb[0].mxu0 %v522
    %v655 = vpop.f32.mrb[0].mxu0
    %v656 = vadd.f32 0.0, %v655
    %v657 = vpop.f32.mrb[0].mxu0
    %658 = vmatprep.mubr.f32.mxu0 0.0
    %659 = vmatmul.mubr.f32.gmra.mrb[0].mxu0 %v525
    %v660 = vpop.f32.mrb[0].mxu0
    %v661 = vadd.f32 0.0, %v660
    %v662 = vpop.f32.mrb[0].mxu0
    %663 = vmatprep.mubr.f32.mxu0 0.0
    %664 = vmatmul.mubr.f32.gmra.mrb[0].mxu0 %v528
    %v665 = vpop.f32.mrb[0].mxu0
    %v666 = vadd.f32 0.0, %v665
    %v667 = vpop.f32.mrb[0].mxu0
    %668 = vmatprep.mubr.f32.mxu0 0.0
    %669 = vmatmul.mubr.f32.gmra.mrb[0].mxu0 %v531
    %v670 = vpop.f32.mrb[0].mxu0
    %v671 = vadd.f32 0.0, %v670
    %v672 = vpop.f32.mrb[0].mxu0
    %673 = vmatprep.mubr.f32.mxu0 0.0
    %674 = vmatmul.mubr.f32.gmra.mrb[0].mxu0 %v534
    %v675 = vpop.f32.mrb[0].mxu0
    %v676 = vadd.f32 0.0, %v675
    %v677 = vpop.f32.mrb[0].mxu0
    %678 = vmatprep.mubr.f32.mxu0 0.0
    %679 = vmatmul.mubr.f32.gmra.mrb[0].mxu0 %v537
    %v680 = vpop.f32.mrb[0].mxu0
    %v681 = vadd.f32 0.0, %v680
    %v682 = vpop.f32.mrb[0].mxu0
    %683 = vdwg.mxu0
    %v685 = vsel %vm90, %v443, 0
    %v688 = vsel %vm90, %v444, 0
    %v691 = vsel %vm90, %v445, 0
    %v694 = vsel %vm90, %v446, 0
    %v697 = vsel %vm90, %v447, 0
    %v700 = vsel %vm90, %v448, 0
    %v703 = vsel %vm90, %v449, 0
    %v706 = vsel %vm90, %v450, 0
    %v709 = vsel %vm90, %v451, 0
    %v712 = vsel %vm90, %v452, 0
    %v715 = vsel %vm90, %v453, 0
    %v718 = vsel %vm90, %v454, 0
    %v721 = vsel %vm90, %v455, 0
    %v724 = vsel %vm90, %v456, 0
    %v727 = vsel %vm90, %v457, 0
    %v730 = vsel %vm90, %v458, 0
    %732 = vmatprep.subr.mxu0 0.0
    %733 = vmatpush1.msra.mxu0 %v475
    %734 = vmatprep.subr.mxu0 0.0
    %735 = vmatpush1.msra.mxu0 %v476
    %736 = vmatprep.subr.mxu0 0.0
    %737 = vmatpush1.msra.mxu0 %v477
    %738 = vmatprep.subr.mxu0 0.0
    %739 = vmatpush1.msra.mxu0 %v478
    %740 = vmatprep.subr.mxu0 0.0
    %741 = vmatpush1.msra.mxu0 %v479
    %742 = vmatprep.subr.mxu0 0.0
    %743 = vmatpush1.msra.mxu0 %v480
    %744 = vmatprep.subr.mxu0 0.0
    %745 = vmatpush1.msra.mxu0 %v481
    %746 = vmatprep.subr.mxu0 0.0
    %747 = vmatpush1.msra.mxu0 %v482
    %748 = vmatprep.subr.mxu0 0.0
    %749 = vmatpush1.msra.mxu0 0.0
    %750 = vmatprep.subr.mxu0 0.0
    %751 = vmatpush1.msra.mxu0 0.0
    %752 = vmatprep.subr.mxu0 0.0
    %753 = vmatpush1.msra.mxu0 0.0
    %754 = vmatprep.subr.mxu0 0.0
    %755 = vmatpush1.msra.mxu0 0.0
    %756 = vmatprep.subr.mxu0 0.0
    %757 = vmatpush1.msra.mxu0 0.0
    %758 = vmatprep.subr.mxu0 0.0
    %759 = vmatpush1.msra.mxu0 0.0
    %760 = vmatprep.subr.mxu0 0.0
    %761 = vmatpush1.msra.mxu0 0.0
    %762 = vmatprep.subr.mxu0 0.0
    %763 = vmatpush1.msra.mxu0 0.0
    %764 = vmatprep.subr.mxu0 0.0
    %765 = vmatpush1.msra.mxu0 0.0
    %766 = vmatprep.subr.mxu0 0.0
    %767 = vmatpush1.msra.mxu0 0.0
    %768 = vmatprep.subr.mxu0 0.0
    %769 = vmatpush1.msra.mxu0 0.0
    %770 = vmatprep.subr.mxu0 0.0
    %771 = vmatpush1.msra.mxu0 0.0
    %772 = vmatprep.subr.mxu0 0.0
    %773 = vmatpush1.msra.mxu0 0.0
    %774 = vmatprep.subr.mxu0 0.0
    %775 = vmatpush1.msra.mxu0 0.0
    %776 = vmatprep.subr.mxu0 0.0
    %777 = vmatpush1.msra.mxu0 0.0
    %778 = vmatprep.subr.mxu0 0.0
    %779 = vmatpush1.msra.mxu0 0.0
    %780 = vmatprep.subr.mxu0 0.0
    %781 = vmatpush1.msra.mxu0 0.0
    %782 = vmatprep.subr.mxu0 0.0
    %783 = vmatpush1.msra.mxu0 0.0
    %784 = vmatprep.subr.mxu0 0.0
    %785 = vmatpush1.msra.mxu0 0.0
    %786 = vmatprep.subr.mxu0 0.0
    %787 = vmatpush1.msra.mxu0 0.0
    %788 = vmatprep.subr.mxu0 0.0
    %789 = vmatpush1.msra.mxu0 0.0
    %790 = vmatprep.subr.mxu0 0.0
    %791 = vmatpush1.msra.mxu0 0.0
    %792 = vmatprep.subr.mxu0 0.0
    %793 = vmatpush1.msra.mxu0 0.0
    %794 = vmatprep.subr.mxu0 0.0
    %795 = vmatpush1.msra.mxu0 0.0
    %796 = vmatprep.mubr.f32.mxu0 0.0
    %797 = vmatmul.mubr.f32.gmra.mrb[0].mxu0 %v685
    %v798 = vpop.f32.mrb[0].mxu0
    %v799 = vadd.f32 %v606, %v798
    %v800 = vpop.f32.mrb[0].mxu0
    %801 = vmatprep.mubr.f32.mxu0 0.0
    %802 = vmatmul.mubr.f32.gmra.mrb[0].mxu0 %v688
    %v803 = vpop.f32.mrb[0].mxu0
    %v804 = vadd.f32 %v611, %v803
    %v805 = vpop.f32.mrb[0].mxu0
    %806 = vmatprep.mubr.f32.mxu0 0.0
    %807 = vmatmul.mubr.f32.gmra.mrb[0].mxu0 %v691
    %v808 = vpop.f32.mrb[0].mxu0
    %v809 = vadd.f32 %v616, %v808
    %v810 = vpop.f32.mrb[0].mxu0
    %811 = vmatprep.mubr.f32.mxu0 0.0
    %812 = vmatmul.mubr.f32.gmra.mrb[0].mxu0 %v694
    %v813 = vpop.f32.mrb[0].mxu0
    %v814 = vadd.f32 %v621, %v813
    %v815 = vpop.f32.mrb[0].mxu0
    %816 = vmatprep.mubr.f32.mxu0 0.0
    %817 = vmatmul.mubr.f32.gmra.mrb[0].mxu0 %v697
    %v818 = vpop.f32.mrb[0].mxu0
    %v819 = vadd.f32 %v626, %v818
    %v820 = vpop.f32.mrb[0].mxu0
    %821 = vmatprep.mubr.f32.mxu0 0.0
    %822 = vmatmul.mubr.f32.gmra.mrb[0].mxu0 %v700
    %v823 = vpop.f32.mrb[0].mxu0
    %v824 = vadd.f32 %v631, %v823
    %v825 = vpop.f32.mrb[0].mxu0
    %826 = vmatprep.mubr.f32.mxu0 0.0
    %827 = vmatmul.mubr.f32.gmra.mrb[0].mxu0 %v703
    %v828 = vpop.f32.mrb[0].mxu0
    %v829 = vadd.f32 %v636, %v828
    %v830 = vpop.f32.mrb[0].mxu0
    %831 = vmatprep.mubr.f32.mxu0 0.0
    %832 = vmatmul.mubr.f32.gmra.mrb[0].mxu0 %v706
    %v833 = vpop.f32.mrb[0].mxu0
    %v834 = vadd.f32 %v641, %v833
    %v835 = vpop.f32.mrb[0].mxu0
    %836 = vmatprep.mubr.f32.mxu0 0.0
    %837 = vmatmul.mubr.f32.gmra.mrb[0].mxu0 %v709
    %v838 = vpop.f32.mrb[0].mxu0
    %v839 = vadd.f32 %v646, %v838
    %v840 = vpop.f32.mrb[0].mxu0
    %841 = vmatprep.mubr.f32.mxu0 0.0
    %842 = vmatmul.mubr.f32.gmra.mrb[0].mxu0 %v712
    %v843 = vpop.f32.mrb[0].mxu0
    %v844 = vadd.f32 %v651, %v843
    %v845 = vpop.f32.mrb[0].mxu0
    %846 = vmatprep.mubr.f32.mxu0 0.0
    %847 = vmatmul.mubr.f32.gmra.mrb[0].mxu0 %v715
    %v848 = vpop.f32.mrb[0].mxu0
    %v849 = vadd.f32 %v656, %v848
    %v850 = vpop.f32.mrb[0].mxu0
    %851 = vmatprep.mubr.f32.mxu0 0.0
    %852 = vmatmul.mubr.f32.gmra.mrb[0].mxu0 %v718
    %v853 = vpop.f32.mrb[0].mxu0
    %v854 = vadd.f32 %v661, %v853
    %v855 = vpop.f32.mrb[0].mxu0
    %856 = vmatprep.mubr.f32.mxu0 0.0
    %857 = vmatmul.mubr.f32.gmra.mrb[0].mxu0 %v721
    %v858 = vpop.f32.mrb[0].mxu0
    %v859 = vadd.f32 %v666, %v858
    %v860 = vpop.f32.mrb[0].mxu0
    %861 = vmatprep.mubr.f32.mxu0 0.0
    %862 = vmatmul.mubr.f32.gmra.mrb[0].mxu0 %v724
    %v863 = vpop.f32.mrb[0].mxu0
    %v864 = vadd.f32 %v671, %v863
    %v865 = vpop.f32.mrb[0].mxu0
    %866 = vmatprep.mubr.f32.mxu0 0.0
    %867 = vmatmul.mubr.f32.gmra.mrb[0].mxu0 %v727
    %v868 = vpop.f32.mrb[0].mxu0
    %v869 = vadd.f32 %v676, %v868
    %v870 = vpop.f32.mrb[0].mxu0
    %871 = vmatprep.mubr.f32.mxu0 0.0
    %872 = vmatmul.mubr.f32.gmra.mrb[0].mxu0 %v730
    %v873 = vpop.f32.mrb[0].mxu0
    %v874 = vadd.f32 %v681, %v873
    %v875 = vpop.f32.mrb[0].mxu0
    %876 = vdwg.mxu0
    %v877 = vld [vmem:[%s3] sm:$0x1]
    %v879 = vlaneseq
    %v880 = vshrl.u32 %v879, 7
    %v881 = vsub.s32 0, %v880
    %v882 = vrot.slane %v877, %v881
    %v884 = vadd.f32 %v799, %v882
    %v885 = vadd.f32 %v804, %v882
    %v886 = vadd.f32 %v809, %v882
    %v887 = vadd.f32 %v814, %v882
    %v888 = vadd.f32 %v819, %v882
    %v889 = vadd.f32 %v824, %v882
    %v890 = vadd.f32 %v829, %v882
    %v891 = vadd.f32 %v834, %v882
    %v892 = vadd.f32 %v839, %v882
    %v893 = vadd.f32 %v844, %v882
    %v894 = vadd.f32 %v849, %v882
    %v895 = vadd.f32 %v854, %v882
    %v896 = vadd.f32 %v859, %v882
    %v897 = vadd.f32 %v864, %v882
    %v898 = vadd.f32 %v869, %v882
    %v899 = vadd.f32 %v874, %v882
    %900 = vst.msk [vmem:[%s4] sm:$0xff] %vm90, %v884
    %901 = vst.msk [vmem:[%s4 + $0x8] sm:$0xff] %vm90, %v885
    %902 = vst.msk [vmem:[%s4 + $0x10] sm:$0xff] %vm90, %v886
    %903 = vst.msk [vmem:[%s4 + $0x18] sm:$0xff] %vm90, %v887
    %904 = vst.msk [vmem:[%s4 + $0x20] sm:$0xff] %vm90, %v888
    %905 = vst.msk [vmem:[%s4 + $0x28] sm:$0xff] %vm90, %v889
    %906 = vst.msk [vmem:[%s4 + $0x30] sm:$0xff] %vm90, %v890
    %907 = vst.msk [vmem:[%s4 + $0x38] sm:$0xff] %vm90, %v891
    %908 = vst.msk [vmem:[%s4 + $0x40] sm:$0xff] %vm90, %v892
    %909 = vst.msk [vmem:[%s4 + $0x48] sm:$0xff] %vm90, %v893
    %910 = vst.msk [vmem:[%s4 + $0x50] sm:$0xff] %vm90, %v894
    %911 = vst.msk [vmem:[%s4 + $0x58] sm:$0xff] %vm90, %v895
    %912 = vst.msk [vmem:[%s4 + $0x60] sm:$0xff] %vm90, %v896
    %913 = vst.msk [vmem:[%s4 + $0x68] sm:$0xff] %vm90, %v897
    %914 = vst.msk [vmem:[%s4 + $0x70] sm:$0xff] %vm90, %v898
    %915 = vst.msk [vmem:[%s4 + $0x78] sm:$0xff] %vm90, %v899
    // Predicated region
    $region30: #{tpu_custom_call.1} parent=1 // pred_check
      _
    $region31: #{tpu_custom_call.1} parent=1 // pred_check_branch
      %917 = sbr.rel (0) target = $region33
    $region32: #{tpu_custom_call.1} parent=1 // pred_region
      _
    $region33: #{tpu_custom_call.1} parent=1 // pred_fallthru
      _
    // Predicated region
    $region34: #{tpu_custom_call.1} parent=1 // pred_check
      _
    $region35: #{tpu_custom_call.1} parent=1 // pred_check_branch
      %919 = sbr.rel (0) target = $region37
    $region36: #{tpu_custom_call.1} parent=1 // pred_region
      _
    $region37: #{tpu_custom_call.1} parent=1 // pred_fallthru
      _
    %920 = vsyncpa [#allocation3], 1
    %921 = vsyncpa [#allocation5], 1

// kernel: tpu_custom_call.1
$region0: #{tpu_custom_call.1}
  #allocation0 [shape = 'u32[]', space=smem, size = 0x4, offset = 0x4, fixed_abs, tag = 'smem constant byte address 0x4 - core index']
  #allocation1 [shape = 'u32[144,128]{1,0:T(1,128)}', space=vmem, size = 0x12000, scoped, tag = 'internal scratch']
  %s0 = inlined_call_operand.hbm [shape: f32[16,2,8,64], index: 0, kind: input, shape index: {}]
  %s1 = inlined_call_operand.hbm [shape: f32[64,64], index: 1, kind: input, shape index: {}]
  %s2 = inlined_call_operand.hbm [shape: f32[64,64], index: 2, kind: input, shape index: {}]
  %s3 = inlined_call_operand.vmem [shape: f32[1,64], index: 3, kind: input, shape index: {}]
  %s4 = inlined_call_operand.vmem [shape: f32[128,64], index: 4, kind: output, shape index: {}]
  %s5 = sld [smem:[#allocation0]]
  $region38: #{tpu_custom_call.1} parent=0
    _
  %s7 = ssub.s32 1, %s5
  %s8 = scalar_select 0, %s7, %s5
  $region1: #{tpu_custom_call.1} parent=0
    #allocation2 [shape = 'u8[131072]{0}', space=vmem, size = 0x20000, scoped, tag = 'input window, operand 0, single buffered']
    #allocation3 [shape = 's32[1]{0}', space=sflag, size = 0x4, scoped, tag = 'scoped memory for tpu_custom_call.1']
    #allocation4 [shape = 'u8[32768]{0}', space=vmem, size = 0x8000, scoped, tag = 'input window, operand 1, single buffered']
    #allocation5 [shape = 's32[1]{0}', space=sflag, size = 0x4, scoped, tag = 'scoped memory for tpu_custom_call.1']
    #allocation6 [shape = 'u8[32768]{0}', space=vmem, size = 0x8000, scoped, tag = 'input window, operand 2, single buffered']
    %9 = vsyncpa [#allocation3], 0
    %10 = vsyncpa [#allocation5], 0
    // Predicated region
    $region2: #{tpu_custom_call.1} parent=1 // pred_check
      _
    $region3: #{tpu_custom_call.1} parent=1 // pred_check_branch
      %12 = sbr.rel (0) target = $region5
    $region4: #{tpu_custom_call.1} parent=1 // pred_region
      %s14 = ssub.s32 4096, 4096
      %15 = vsyncadd [#allocation3], %s14
      %s16 = sshll.u32 [#allocation2], 4
      %s17 = int_to_ptr.vmem [resolvable:$true] %s16
      %22 = dma.hbm_to_vmem [thread:$0]  %s0, 4096, %s17, [#allocation3], 128, 128, 8
    $region5: #{tpu_custom_call.1} parent=1 // pred_fallthru
      _
    // Predicated region
    $region6: #{tpu_custom_call.1} parent=1 // pred_check
      _
    $region7: #{tpu_custom_call.1} parent=1 // pred_check_branch
      %24 = sbr.rel (0) target = $region9
    $region8: #{tpu_custom_call.1} parent=1 // pred_region
      %s26 = ssub.s32 1024, 1024
      %27 = vsyncadd [#allocation5], %s26
      %s28 = sshll.u32 [#allocation4], 4
      %s29 = int_to_ptr.vmem [resolvable:$true] %s28
      %34 = dma.hbm_to_vmem [thread:$0]  %s1, 1024, %s29, [#allocation5], 128, 128, 8
    $region9: #{tpu_custom_call.1} parent=1 // pred_fallthru
      _
    // Predicated region
    $region10: #{tpu_custom_call.1} parent=1 // pred_check
      _
    $region11: #{tpu_custom_call.1} parent=1 // pred_check_branch
      %36 = sbr.rel (0) target = $region13
    $region12: #{tpu_custom_call.1} parent=1 // pred_region
      %s38 = ssub.s32 1024, 1024
      %39 = vsyncadd [#allocation5], %s38
      %s40 = sshll.u32 [#allocation6], 4
      %s41 = int_to_ptr.vmem [resolvable:$true] %s40
      %46 = dma.hbm_to_vmem [thread:$0]  %s2, 1024, %s41, [#allocation5], 128, 128, 8
    $region13: #{tpu_custom_call.1} parent=1 // pred_fallthru
      _
    // Predicated region
    $region14: #{tpu_custom_call.1} parent=1 // pred_check
      _
    $region15: #{tpu_custom_call.1} parent=1 // pred_check_branch
      %48 = sbr.rel (0) target = $region17
    $region16: #{tpu_custom_call.1} parent=1 // pred_region
      _
    $region17: #{tpu_custom_call.1} parent=1 // pred_fallthru
      _
    // Predicated region
    $region18: #{tpu_custom_call.1} parent=1 // pred_check
      _
    $region19: #{tpu_custom_call.1} parent=1 // pred_check_branch
      %50 = sbr.rel (0) target = $region21
    $region20: #{tpu_custom_call.1} parent=1 // pred_region
      %51 = dma.done [#allocation3], 4096
    $region21: #{tpu_custom_call.1} parent=1 // pred_fallthru
      _
    // Predicated region
    $region22: #{tpu_custom_call.1} parent=1 // pred_check
      _
    $region23: #{tpu_custom_call.1} parent=1 // pred_check_branch
      %53 = sbr.rel (0) target = $region25
    $region24: #{tpu_custom_call.1} parent=1 // pred_region
      %54 = dma.done [#allocation5], 1024
    $region25: #{tpu_custom_call.1} parent=1 // pred_fallthru
      _
    // Predicated region
    $region26: #{tpu_custom_call.1} parent=1 // pred_check
      _
    $region27: #{tpu_custom_call.1} parent=1 // pred_check_branch
      %56 = sbr.rel (0) target = $region29
    $region28: #{tpu_custom_call.1} parent=1 // pred_region
      %57 = dma.done [#allocation5], 1024
    $region29: #{tpu_custom_call.1} parent=1 // pred_fallthru
      _
    %v58 = vld [vmem:[#allocation2] sm:$0xff]
    %v59 = vld [vmem:[#allocation2 + $0x8] sm:$0xff]
    %v60 = vld [vmem:[#allocation2 + $0x10] sm:$0xff]
    %v61 = vld [vmem:[#allocation2 + $0x18] sm:$0xff]
    %v62 = vld [vmem:[#allocation2 + $0x20] sm:$0xff]
    %v63 = vld [vmem:[#allocation2 + $0x28] sm:$0xff]
    %v64 = vld [vmem:[#allocation2 + $0x30] sm:$0xff]
    %v65 = vld [vmem:[#allocation2 + $0x38] sm:$0xff]
    %v66 = vld [vmem:[#allocation2 + $0x40] sm:$0xff]
    %v67 = vld [vmem:[#allocation2 + $0x48] sm:$0xff]
    %v68 = vld [vmem:[#allocation2 + $0x50] sm:$0xff]
    %v69 = vld [vmem:[#allocation2 + $0x58] sm:$0xff]
    %v70 = vld [vmem:[#allocation2 + $0x60] sm:$0xff]
    %v71 = vld [vmem:[#allocation2 + $0x68] sm:$0xff]
    %v72 = vld [vmem:[#allocation2 + $0x70] sm:$0xff]
    %v73 = vld [vmem:[#allocation2 + $0x78] sm:$0xff]
    %v74 = vld [vmem:[#allocation2 + $0x80] sm:$0xff]
    %v75 = vld [vmem:[#allocation2 + $0x88] sm:$0xff]
    %v76 = vld [vmem:[#allocation2 + $0x90] sm:$0xff]
    %v77 = vld [vmem:[#allocation2 + $0x98] sm:$0xff]
    %v78 = vld [vmem:[#allocation2 + $0xa0] sm:$0xff]
    %v79 = vld [vmem:[#allocation2 + $0xa8] sm:$0xff]
    %v80 = vld [vmem:[#allocation2 + $0xb0] sm:$0xff]
    %v81 = vld [vmem:[#allocation2 + $0xb8] sm:$0xff]
    %v82 = vld [vmem:[#allocation2 + $0xc0] sm:$0xff]
    %v83 = vld [vmem:[#allocation2 + $0xc8] sm:$0xff]
    %v84 = vld [vmem:[#allocation2 + $0xd0] sm:$0xff]
    %v85 = vld [vmem:[#allocation2 + $0xd8] sm:$0xff]
    %v86 = vld [vmem:[#allocation2 + $0xe0] sm:$0xff]
    %v87 = vld [vmem:[#allocation2 + $0xe8] sm:$0xff]
    %v88 = vld [vmem:[#allocation2 + $0xf0] sm:$0xff]
    %v89 = vld [vmem:[#allocation2 + $0xf8] sm:$0xff]
    %vm90 = vcmask 523264
    %v91 = vsel %vm90, %v58, 0.0
    %92 = vadd.xlane.f32.xlu0 %v91
    %v93 = vpop.xlane.xlu0 %92
    %v94 = vsel %vm90, %v60, 0.0
    %95 = vadd.xlane.f32.xlu0 %v94
    %v96 = vpop.xlane.xlu0 %95
    %v97 = vsel %vm90, %v62, 0.0
    %98 = vadd.xlane.f32.xlu0 %v97
    %v99 = vpop.xlane.xlu0 %98
    %v100 = vsel %vm90, %v64, 0.0
    %101 = vadd.xlane.f32.xlu0 %v100
    %v102 = vpop.xlane.xlu0 %101
    %v103 = vsel %vm90, %v66, 0.0
    %104 = vadd.xlane.f32.xlu0 %v103
    %v105 = vpop.xlane.xlu0 %104
    %v106 = vsel %vm90, %v68, 0.0
    %107 = vadd.xlane.f32.xlu0 %v106
    %v108 = vpop.xlane.xlu0 %107
    %v109 = vsel %vm90, %v70, 0.0
    %110 = vadd.xlane.f32.xlu0 %v109
    %v111 = vpop.xlane.xlu0 %110
    %v112 = vsel %vm90, %v72, 0.0
    %113 = vadd.xlane.f32.xlu0 %v112
    %v114 = vpop.xlane.xlu0 %113
    %v115 = vsel %vm90, %v74, 0.0
    %116 = vadd.xlane.f32.xlu0 %v115
    %v117 = vpop.xlane.xlu0 %116
    %v118 = vsel %vm90, %v76, 0.0
    %119 = vadd.xlane.f32.xlu0 %v118
    %v120 = vpop.xlane.xlu0 %119
    %v121 = vsel %vm90, %v78, 0.0
    %122 = vadd.xlane.f32.xlu0 %v121
    %v123 = vpop.xlane.xlu0 %122
    %v124 = vsel %vm90, %v80, 0.0
    %125 = vadd.xlane.f32.xlu0 %v124
    %v126 = vpop.xlane.xlu0 %125
    %v127 = vsel %vm90, %v82, 0.0
    %128 = vadd.xlane.f32.xlu0 %v127
    %v129 = vpop.xlane.xlu0 %128
    %v130 = vsel %vm90, %v84, 0.0
    %131 = vadd.xlane.f32.xlu0 %v130
    %v132 = vpop.xlane.xlu0 %131
    %v133 = vsel %vm90, %v86, 0.0
    %134 = vadd.xlane.f32.xlu0 %v133
    %v135 = vpop.xlane.xlu0 %134
    %v136 = vsel %vm90, %v88, 0.0
    %137 = vadd.xlane.f32.xlu0 %v136
    %v138 = vpop.xlane.xlu0 %137
    %v139 = vsel %vm90, %v59, 0.0
    %140 = vadd.xlane.f32.xlu0 %v139
    %v141 = vpop.xlane.xlu0 %140
    %v142 = vsel %vm90, %v61, 0.0
    %143 = vadd.xlane.f32.xlu0 %v142
    %v144 = vpop.xlane.xlu0 %143
    %v145 = vsel %vm90, %v63, 0.0
    %146 = vadd.xlane.f32.xlu0 %v145
    %v147 = vpop.xlane.xlu0 %146
    %v148 = vsel %vm90, %v65, 0.0
    %149 = vadd.xlane.f32.xlu0 %v148
    %v150 = vpop.xlane.xlu0 %149
    %v151 = vsel %vm90, %v67, 0.0
    %152 = vadd.xlane.f32.xlu0 %v151
    %v153 = vpop.xlane.xlu0 %152
    %v154 = vsel %vm90, %v69, 0.0
    %155 = vadd.xlane.f32.xlu0 %v154
    %v156 = vpop.xlane.xlu0 %155
    %v157 = vsel %vm90, %v71, 0.0
    %158 = vadd.xlane.f32.xlu0 %v157
    %v159 = vpop.xlane.xlu0 %158
    %v160 = vsel %vm90, %v73, 0.0
    %161 = vadd.xlane.f32.xlu0 %v160
    %v162 = vpop.xlane.xlu0 %161
    %v163 = vsel %vm90, %v75, 0.0
    %164 = vadd.xlane.f32.xlu0 %v163
    %v165 = vpop.xlane.xlu0 %164
    %v166 = vsel %vm90, %v77, 0.0
    %167 = vadd.xlane.f32.xlu0 %v166
    %v168 = vpop.xlane.xlu0 %167
    %v169 = vsel %vm90, %v79, 0.0
    %170 = vadd.xlane.f32.xlu0 %v169
    %v171 = vpop.xlane.xlu0 %170
    %v172 = vsel %vm90, %v81, 0.0
    %173 = vadd.xlane.f32.xlu0 %v172
    %v174 = vpop.xlane.xlu0 %173
    %v175 = vsel %vm90, %v83, 0.0
    %176 = vadd.xlane.f32.xlu0 %v175
    %v177 = vpop.xlane.xlu0 %176
    %v178 = vsel %vm90, %v85, 0.0
    %179 = vadd.xlane.f32.xlu0 %v178
    %v180 = vpop.xlane.xlu0 %179
    %v181 = vsel %vm90, %v87, 0.0
    %182 = vadd.xlane.f32.xlu0 %v181
    %v183 = vpop.xlane.xlu0 %182
    %v184 = vsel %vm90, %v89, 0.0
    %185 = vadd.xlane.f32.xlu0 %v184
    %v186 = vpop.xlane.xlu0 %185
    %v187 = vadd.f32 %v93, %v141
    %v188 = vadd.f32 %v96, %v144
    %v189 = vadd.f32 %v99, %v147
    %v190 = vadd.f32 %v102, %v150
    %v191 = vadd.f32 %v105, %v153
    %v192 = vadd.f32 %v108, %v156
    %v193 = vadd.f32 %v111, %v159
    %v194 = vadd.f32 %v114, %v162
    %v195 = vadd.f32 %v117, %v165
    %v196 = vadd.f32 %v120, %v168
    %v197 = vadd.f32 %v123, %v171
    %v198 = vadd.f32 %v126, %v174
    %v199 = vadd.f32 %v129, %v177
    %v200 = vadd.f32 %v132, %v180
    %v201 = vadd.f32 %v135, %v183
    %v202 = vadd.f32 %v138, %v186
    %v203 = vmul.f32 %v187, 0.0078125
    %v204 = vmul.f32 %v188, 0.0078125
    %v205 = vmul.f32 %v189, 0.0078125
    %v206 = vmul.f32 %v190, 0.0078125
    %v207 = vmul.f32 %v191, 0.0078125
    %v208 = vmul.f32 %v192, 0.0078125
    %v209 = vmul.f32 %v193, 0.0078125
    %v210 = vmul.f32 %v194, 0.0078125
    %v211 = vmul.f32 %v195, 0.0078125
    %v212 = vmul.f32 %v196, 0.0078125
    %v213 = vmul.f32 %v197, 0.0078125
    %v214 = vmul.f32 %v198, 0.0078125
    %v215 = vmul.f32 %v199, 0.0078125
    %v216 = vmul.f32 %v200, 0.0078125
    %v217 = vmul.f32 %v201, 0.0078125
    %v218 = vmul.f32 %v202, 0.0078125
    %v219 = vsub.f32 %v58, %v203
    %v220 = vsub.f32 %v60, %v204
    %v221 = vsub.f32 %v62, %v205
    %v222 = vsub.f32 %v64, %v206
    %v223 = vsub.f32 %v66, %v207
    %v224 = vsub.f32 %v68, %v208
    %v225 = vsub.f32 %v70, %v209
    %v226 = vsub.f32 %v72, %v210
    %v227 = vsub.f32 %v74, %v211
    %v228 = vsub.f32 %v76, %v212
    %v229 = vsub.f32 %v78, %v213
    %v230 = vsub.f32 %v80, %v214
    %v231 = vsub.f32 %v82, %v215
    %v232 = vsub.f32 %v84, %v216
    %v233 = vsub.f32 %v86, %v217
    %v234 = vsub.f32 %v88, %v218
    %v235 = vsub.f32 %v59, %v203
    %v236 = vsub.f32 %v61, %v204
    %v237 = vsub.f32 %v63, %v205
    %v238 = vsub.f32 %v65, %v206
    %v239 = vsub.f32 %v67, %v207
    %v240 = vsub.f32 %v69, %v208
    %v241 = vsub.f32 %v71, %v209
    %v242 = vsub.f32 %v73, %v210
    %v243 = vsub.f32 %v75, %v211
    %v244 = vsub.f32 %v77, %v212
    %v245 = vsub.f32 %v79, %v213
    %v246 = vsub.f32 %v81, %v214
    %v247 = vsub.f32 %v83, %v215
    %v248 = vsub.f32 %v85, %v216
    %v249 = vsub.f32 %v87, %v217
    %v250 = vsub.f32 %v89, %v218
    %v251 = vmul.f32 %v219, %v219
    %v252 = vmul.f32 %v220, %v220
    %v253 = vmul.f32 %v221, %v221
    %v254 = vmul.f32 %v222, %v222
    %v255 = vmul.f32 %v223, %v223
    %v256 = vmul.f32 %v224, %v224
    %v257 = vmul.f32 %v225, %v225
    %v258 = vmul.f32 %v226, %v226
    %v259 = vmul.f32 %v227, %v227
    %v260 = vmul.f32 %v228, %v228
    %v261 = vmul.f32 %v229, %v229
    %v262 = vmul.f32 %v230, %v230
    %v263 = vmul.f32 %v231, %v231
    %v264 = vmul.f32 %v232, %v232
    %v265 = vmul.f32 %v233, %v233
    %v266 = vmul.f32 %v234, %v234
    %v267 = vsel %vm90, %v251, 0.0
    %268 = vadd.xlane.f32.xlu0 %v267
    %v269 = vpop.xlane.xlu0 %268
    %v270 = vsel %vm90, %v252, 0.0
    %271 = vadd.xlane.f32.xlu0 %v270
    %v272 = vpop.xlane.xlu0 %271
    %v273 = vsel %vm90, %v253, 0.0
    %274 = vadd.xlane.f32.xlu0 %v273
    %v275 = vpop.xlane.xlu0 %274
    %v276 = vsel %vm90, %v254, 0.0
    %277 = vadd.xlane.f32.xlu0 %v276
    %v278 = vpop.xlane.xlu0 %277
    %v279 = vsel %vm90, %v255, 0.0
    %280 = vadd.xlane.f32.xlu0 %v279
    %v281 = vpop.xlane.xlu0 %280
    %v282 = vsel %vm90, %v256, 0.0
    %283 = vadd.xlane.f32.xlu0 %v282
    %v284 = vpop.xlane.xlu0 %283
    %v285 = vsel %vm90, %v257, 0.0
    %286 = vadd.xlane.f32.xlu0 %v285
    %v287 = vpop.xlane.xlu0 %286
    %v288 = vsel %vm90, %v258, 0.0
    %289 = vadd.xlane.f32.xlu0 %v288
    %v290 = vpop.xlane.xlu0 %289
    %v291 = vsel %vm90, %v259, 0.0
    %292 = vadd.xlane.f32.xlu0 %v291
    %v293 = vpop.xlane.xlu0 %292
    %v294 = vsel %vm90, %v260, 0.0
    %295 = vadd.xlane.f32.xlu0 %v294
    %v296 = vpop.xlane.xlu0 %295
    %v297 = vsel %vm90, %v261, 0.0
    %298 = vadd.xlane.f32.xlu0 %v297
    %v299 = vpop.xlane.xlu0 %298
    %v300 = vsel %vm90, %v262, 0.0
    %301 = vadd.xlane.f32.xlu0 %v300
    %v302 = vpop.xlane.xlu0 %301
    %v303 = vsel %vm90, %v263, 0.0
    %304 = vadd.xlane.f32.xlu0 %v303
    %v305 = vpop.xlane.xlu0 %304
    %v306 = vsel %vm90, %v264, 0.0
    %307 = vadd.xlane.f32.xlu0 %v306
    %v308 = vpop.xlane.xlu0 %307
    %v309 = vsel %vm90, %v265, 0.0
    %310 = vadd.xlane.f32.xlu0 %v309
    %v311 = vpop.xlane.xlu0 %310
    %v312 = vsel %vm90, %v266, 0.0
    %313 = vadd.xlane.f32.xlu0 %v312
    %v314 = vpop.xlane.xlu0 %313
    %v315 = vmul.f32 %v235, %v235
    %v316 = vmul.f32 %v236, %v236
    %v317 = vmul.f32 %v237, %v237
    %v318 = vmul.f32 %v238, %v238
    %v319 = vmul.f32 %v239, %v239
    %v320 = vmul.f32 %v240, %v240
    %v321 = vmul.f32 %v241, %v241
    %v322 = vmul.f32 %v242, %v242
    %v323 = vmul.f32 %v243, %v243
    %v324 = vmul.f32 %v244, %v244
    %v325 = vmul.f32 %v245, %v245
    %v326 = vmul.f32 %v246, %v246
    %v327 = vmul.f32 %v247, %v247
    %v328 = vmul.f32 %v248, %v248
    %v329 = vmul.f32 %v249, %v249
    %v330 = vmul.f32 %v250, %v250
    %v331 = vsel %vm90, %v315, 0.0
    %332 = vadd.xlane.f32.xlu0 %v331
    %v333 = vpop.xlane.xlu0 %332
    %v334 = vsel %vm90, %v316, 0.0
    %335 = vadd.xlane.f32.xlu0 %v334
    %v336 = vpop.xlane.xlu0 %335
    %v337 = vsel %vm90, %v317, 0.0
    %338 = vadd.xlane.f32.xlu0 %v337
    %v339 = vpop.xlane.xlu0 %338
    %v340 = vsel %vm90, %v318, 0.0
    %341 = vadd.xlane.f32.xlu0 %v340
    %v342 = vpop.xlane.xlu0 %341
    %v343 = vsel %vm90, %v319, 0.0
    %344 = vadd.xlane.f32.xlu0 %v343
    %v345 = vpop.xlane.xlu0 %344
    %v346 = vsel %vm90, %v320, 0.0
    %347 = vadd.xlane.f32.xlu0 %v346
    %v348 = vpop.xlane.xlu0 %347
    %v349 = vsel %vm90, %v321, 0.0
    %350 = vadd.xlane.f32.xlu0 %v349
    %v351 = vpop.xlane.xlu0 %350
    %v352 = vsel %vm90, %v322, 0.0
    %353 = vadd.xlane.f32.xlu0 %v352
    %v354 = vpop.xlane.xlu0 %353
    %v355 = vsel %vm90, %v323, 0.0
    %356 = vadd.xlane.f32.xlu0 %v355
    %v357 = vpop.xlane.xlu0 %356
    %v358 = vsel %vm90, %v324, 0.0
    %359 = vadd.xlane.f32.xlu0 %v358
    %v360 = vpop.xlane.xlu0 %359
    %v361 = vsel %vm90, %v325, 0.0
    %362 = vadd.xlane.f32.xlu0 %v361
    %v363 = vpop.xlane.xlu0 %362
    %v364 = vsel %vm90, %v326, 0.0
    %365 = vadd.xlane.f32.xlu0 %v364
    %v366 = vpop.xlane.xlu0 %365
    %v367 = vsel %vm90, %v327, 0.0
    %368 = vadd.xlane.f32.xlu0 %v367
    %v369 = vpop.xlane.xlu0 %368
    %v370 = vsel %vm90, %v328, 0.0
    %371 = vadd.xlane.f32.xlu0 %v370
    %v372 = vpop.xlane.xlu0 %371
    %v373 = vsel %vm90, %v329, 0.0
    %374 = vadd.xlane.f32.xlu0 %v373
    %v375 = vpop.xlane.xlu0 %374
    %v376 = vsel %vm90, %v330, 0.0
    %377 = vadd.xlane.f32.xlu0 %v376
    %v378 = vpop.xlane.xlu0 %377
    %v379 = vadd.f32 %v269, %v333
    %v380 = vadd.f32 %v272, %v336
    %v381 = vadd.f32 %v275, %v339
    %v382 = vadd.f32 %v278, %v342
    %v383 = vadd.f32 %v281, %v345
    %v384 = vadd.f32 %v284, %v348
    %v385 = vadd.f32 %v287, %v351
    %v386 = vadd.f32 %v290, %v354
    %v387 = vadd.f32 %v293, %v357
    %v388 = vadd.f32 %v296, %v360
    %v389 = vadd.f32 %v299, %v363
    %v390 = vadd.f32 %v302, %v366
    %v391 = vadd.f32 %v305, %v369
    %v392 = vadd.f32 %v308, %v372
    %v393 = vadd.f32 %v311, %v375
    %v394 = vadd.f32 %v314, %v378
    %v395 = vmul.f32 %v379, 0.0078125
    %v396 = vmul.f32 %v380, 0.0078125
    %v397 = vmul.f32 %v381, 0.0078125
    %v398 = vmul.f32 %v382, 0.0078125
    %v399 = vmul.f32 %v383, 0.0078125
    %v400 = vmul.f32 %v384, 0.0078125
    %v401 = vmul.f32 %v385, 0.0078125
    %v402 = vmul.f32 %v386, 0.0078125
    %v403 = vmul.f32 %v387, 0.0078125
    %v404 = vmul.f32 %v388, 0.0078125
    %v405 = vmul.f32 %v389, 0.0078125
    %v406 = vmul.f32 %v390, 0.0078125
    %v407 = vmul.f32 %v391, 0.0078125
    %v408 = vmul.f32 %v392, 0.0078125
    %v409 = vmul.f32 %v393, 0.0078125
    %v410 = vmul.f32 %v394, 0.0078125
    %v411 = vadd.f32 %v395, 1e-05
    %v412 = vadd.f32 %v396, 1e-05
    %v413 = vadd.f32 %v397, 1e-05
    %v414 = vadd.f32 %v398, 1e-05
    %v415 = vadd.f32 %v399, 1e-05
    %v416 = vadd.f32 %v400, 1e-05
    %v417 = vadd.f32 %v401, 1e-05
    %v418 = vadd.f32 %v402, 1e-05
    %v419 = vadd.f32 %v403, 1e-05
    %v420 = vadd.f32 %v404, 1e-05
    %v421 = vadd.f32 %v405, 1e-05
    %v422 = vadd.f32 %v406, 1e-05
    %v423 = vadd.f32 %v407, 1e-05
    %v424 = vadd.f32 %v408, 1e-05
    %v425 = vadd.f32 %v409, 1e-05
    %v426 = vadd.f32 %v410, 1e-05
    %v427 = vrsqrt.pop %v411
    %v428 = vrsqrt.pop %v412
    %v429 = vrsqrt.pop %v413
    %v430 = vrsqrt.pop %v414
    %v431 = vrsqrt.pop %v415
    %v432 = vrsqrt.pop %v416
    %v433 = vrsqrt.pop %v417
    %v434 = vrsqrt.pop %v418
    %v435 = vrsqrt.pop %v419
    %v436 = vrsqrt.pop %v420
    %v437 = vrsqrt.pop %v421
    %v438 = vrsqrt.pop %v422
    %v439 = vrsqrt.pop %v423
    %v440 = vrsqrt.pop %v424
    %v441 = vrsqrt.pop %v425
    %v442 = vrsqrt.pop %v426
    %v443 = vmul.f32 %v219, %v427
    %v444 = vmul.f32 %v220, %v428
    %v445 = vmul.f32 %v221, %v429
    %v446 = vmul.f32 %v222, %v430
    %v447 = vmul.f32 %v223, %v431
    %v448 = vmul.f32 %v224, %v432
    %v449 = vmul.f32 %v225, %v433
    %v450 = vmul.f32 %v226, %v434
    %v451 = vmul.f32 %v227, %v435
    %v452 = vmul.f32 %v228, %v436
    %v453 = vmul.f32 %v229, %v437
    %v454 = vmul.f32 %v230, %v438
    %v455 = vmul.f32 %v231, %v439
    %v456 = vmul.f32 %v232, %v440
    %v457 = vmul.f32 %v233, %v441
    %v458 = vmul.f32 %v234, %v442
    %v459 = vmul.f32 %v235, %v427
    %v460 = vmul.f32 %v236, %v428
    %v461 = vmul.f32 %v237, %v429
    %v462 = vmul.f32 %v238, %v430
    %v463 = vmul.f32 %v239, %v431
    %v464 = vmul.f32 %v240, %v432
    %v465 = vmul.f32 %v241, %v433
    %v466 = vmul.f32 %v242, %v434
    %v467 = vmul.f32 %v243, %v435
    %v468 = vmul.f32 %v244, %v436
    %v469 = vmul.f32 %v245, %v437
    %v470 = vmul.f32 %v246, %v438
    %v471 = vmul.f32 %v247, %v439
    %v472 = vmul.f32 %v248, %v440
    %v473 = vmul.f32 %v249, %v441
    %v474 = vmul.f32 %v250, %v442
    %v475 = vld [vmem:[#allocation4] sm:$0xff]
    %v476 = vld [vmem:[#allocation4 + $0x8] sm:$0xff]
    %v477 = vld [vmem:[#allocation4 + $0x10] sm:$0xff]
    %v478 = vld [vmem:[#allocation4 + $0x18] sm:$0xff]
    %v479 = vld [vmem:[#allocation4 + $0x20] sm:$0xff]
    %v480 = vld [vmem:[#allocation4 + $0x28] sm:$0xff]
    %v481 = vld [vmem:[#allocation4 + $0x30] sm:$0xff]
    %v482 = vld [vmem:[#allocation4 + $0x38] sm:$0xff]
    %v483 = vld [vmem:[#allocation6] sm:$0xff]
    %v484 = vld [vmem:[#allocation6 + $0x8] sm:$0xff]
    %v485 = vld [vmem:[#allocation6 + $0x10] sm:$0xff]
    %v486 = vld [vmem:[#allocation6 + $0x18] sm:$0xff]
    %v487 = vld [vmem:[#allocation6 + $0x20] sm:$0xff]
    %v488 = vld [vmem:[#allocation6 + $0x28] sm:$0xff]
    %v489 = vld [vmem:[#allocation6 + $0x30] sm:$0xff]
    %v490 = vld [vmem:[#allocation6 + $0x38] sm:$0xff]
    %v492 = vsel %vm90, %v459, 0
    %v495 = vsel %vm90, %v460, 0
    %v498 = vsel %vm90, %v461, 0
    %v501 = vsel %vm90, %v462, 0
    %v504 = vsel %vm90, %v463, 0
    %v507 = vsel %vm90, %v464, 0
    %v510 = vsel %vm90, %v465, 0
    %v513 = vsel %vm90, %v466, 0
    %v516 = vsel %vm90, %v467, 0
    %v519 = vsel %vm90, %v468, 0
    %v522 = vsel %vm90, %v469, 0
    %v525 = vsel %vm90, %v470, 0
    %v528 = vsel %vm90, %v471, 0
    %v531 = vsel %vm90, %v472, 0
    %v534 = vsel %vm90, %v473, 0
    %v537 = vsel %vm90, %v474, 0
    %539 = vmatprep.subr.mxu0 0.0
    %540 = vmatpush1.msra.mxu0 %v483
    %541 = vmatprep.subr.mxu0 0.0
    %542 = vmatpush1.msra.mxu0 %v484
    %543 = vmatprep.subr.mxu0 0.0
    %544 = vmatpush1.msra.mxu0 %v485
    %545 = vmatprep.subr.mxu0 0.0
    %546 = vmatpush1.msra.mxu0 %v486
    %547 = vmatprep.subr.mxu0 0.0
    %548 = vmatpush1.msra.mxu0 %v487
    %549 = vmatprep.subr.mxu0 0.0
    %550 = vmatpush1.msra.mxu0 %v488
    %551 = vmatprep.subr.mxu0 0.0
    %552 = vmatpush1.msra.mxu0 %v489
    %553 = vmatprep.subr.mxu0 0.0
    %554 = vmatpush1.msra.mxu0 %v490
    %555 = vmatprep.subr.mxu0 0.0
    %556 = vmatpush1.msra.mxu0 0.0
    %557 = vmatprep.subr.mxu0 0.0
    %558 = vmatpush1.msra.mxu0 0.0
    %559 = vmatprep.subr.mxu0 0.0
    %560 = vmatpush1.msra.mxu0 0.0
    %561 = vmatprep.subr.mxu0 0.0
    %562 = vmatpush1.msra.mxu0 0.0
    %563 = vmatprep.subr.mxu0 0.0
    %564 = vmatpush1.msra.mxu0 0.0
    %565 = vmatprep.subr.mxu0 0.0
    %566 = vmatpush1.msra.mxu0 0.0
    %567 = vmatprep.subr.mxu0 0.0
    %568 = vmatpush1.msra.mxu0 0.0
    %569 = vmatprep.subr.mxu0 0.0
    %570 = vmatpush1.msra.mxu0 0.0
    %571 = vmatprep.subr.mxu0 0.0
    %572 = vmatpush1.msra.mxu0 0.0
    %573 = vmatprep.subr.mxu0 0.0
    %574 = vmatpush1.msra.mxu0 0.0
    %575 = vmatprep.subr.mxu0 0.0
    %576 = vmatpush1.msra.mxu0 0.0
    %577 = vmatprep.subr.mxu0 0.0
    %578 = vmatpush1.msra.mxu0 0.0
    %579 = vmatprep.subr.mxu0 0.0
    %580 = vmatpush1.msra.mxu0 0.0
    %581 = vmatprep.subr.mxu0 0.0
    %582 = vmatpush1.msra.mxu0 0.0
    %583 = vmatprep.subr.mxu0 0.0
    %584 = vmatpush1.msra.mxu0 0.0
    %585 = vmatprep.subr.mxu0 0.0
    %586 = vmatpush1.msra.mxu0 0.0
    %587 = vmatprep.subr.mxu0 0.0
    %588 = vmatpush1.msra.mxu0 0.0
    %589 = vmatprep.subr.mxu0 0.0
    %590 = vmatpush1.msra.mxu0 0.0
    %591 = vmatprep.subr.mxu0 0.0
    %592 = vmatpush1.msra.mxu0 0.0
    %593 = vmatprep.subr.mxu0 0.0
    %594 = vmatpush1.msra.mxu0 0.0
    %595 = vmatprep.subr.mxu0 0.0
    %596 = vmatpush1.msra.mxu0 0.0
    %597 = vmatprep.subr.mxu0 0.0
    %598 = vmatpush1.msra.mxu0 0.0
    %599 = vmatprep.subr.mxu0 0.0
    %600 = vmatpush1.msra.mxu0 0.0
    %601 = vmatprep.subr.mxu0 0.0
    %602 = vmatpush1.msra.mxu0 0.0
    %603 = vmatprep.mubr.f32.mxu0 0.0
    %604 = vmatmul.mubr.f32.gmra.mrb[0].mxu0 %v492
    %v605 = vpop.f32.mrb[0].mxu0
    %v606 = vadd.f32 0.0, %v605
    %v607 = vpop.f32.mrb[0].mxu0
    %608 = vmatprep.mubr.f32.mxu0 0.0
    %609 = vmatmul.mubr.f32.gmra.mrb[0].mxu0 %v495
    %v610 = vpop.f32.mrb[0].mxu0
    %v611 = vadd.f32 0.0, %v610
    %v612 = vpop.f32.mrb[0].mxu0
    %613 = vmatprep.mubr.f32.mxu0 0.0
    %614 = vmatmul.mubr.f32.gmra.mrb[0].mxu0 %v498
    %v615 = vpop.f32.mrb[0].mxu0
    %v616 = vadd.f32 0.0, %v615
    %v617 = vpop.f32.mrb[0].mxu0
    %618 = vmatprep.mubr.f32.mxu0 0.0
    %619 = vmatmul.mubr.f32.gmra.mrb[0].mxu0 %v501
    %v620 = vpop.f32.mrb[0].mxu0
    %v621 = vadd.f32 0.0, %v620
    %v622 = vpop.f32.mrb[0].mxu0
    %623 = vmatprep.mubr.f32.mxu0 0.0
    %624 = vmatmul.mubr.f32.gmra.mrb[0].mxu0 %v504
    %v625 = vpop.f32.mrb[0].mxu0
    %v626 = vadd.f32 0.0, %v625
    %v627 = vpop.f32.mrb[0].mxu0
    %628 = vmatprep.mubr.f32.mxu0 0.0
    %629 = vmatmul.mubr.f32.gmra.mrb[0].mxu0 %v507
    %v630 = vpop.f32.mrb[0].mxu0
    %v631 = vadd.f32 0.0, %v630
    %v632 = vpop.f32.mrb[0].mxu0
    %633 = vmatprep.mubr.f32.mxu0 0.0
    %634 = vmatmul.mubr.f32.gmra.mrb[0].mxu0 %v510
    %v635 = vpop.f32.mrb[0].mxu0
    %v636 = vadd.f32 0.0, %v635
    %v637 = vpop.f32.mrb[0].mxu0
    %638 = vmatprep.mubr.f32.mxu0 0.0
    %639 = vmatmul.mubr.f32.gmra.mrb[0].mxu0 %v513
    %v640 = vpop.f32.mrb[0].mxu0
    %v641 = vadd.f32 0.0, %v640
    %v642 = vpop.f32.mrb[0].mxu0
    %643 = vmatprep.mubr.f32.mxu0 0.0
    %644 = vmatmul.mubr.f32.gmra.mrb[0].mxu0 %v516
    %v645 = vpop.f32.mrb[0].mxu0
    %v646 = vadd.f32 0.0, %v645
    %v647 = vpop.f32.mrb[0].mxu0
    %648 = vmatprep.mubr.f32.mxu0 0.0
    %649 = vmatmul.mubr.f32.gmra.mrb[0].mxu0 %v519
    %v650 = vpop.f32.mrb[0].mxu0
    %v651 = vadd.f32 0.0, %v650
    %v652 = vpop.f32.mrb[0].mxu0
    %653 = vmatprep.mubr.f32.mxu0 0.0
    %654 = vmatmul.mubr.f32.gmra.mrb[0].mxu0 %v522
    %v655 = vpop.f32.mrb[0].mxu0
    %v656 = vadd.f32 0.0, %v655
    %v657 = vpop.f32.mrb[0].mxu0
    %658 = vmatprep.mubr.f32.mxu0 0.0
    %659 = vmatmul.mubr.f32.gmra.mrb[0].mxu0 %v525
    %v660 = vpop.f32.mrb[0].mxu0
    %v661 = vadd.f32 0.0, %v660
    %v662 = vpop.f32.mrb[0].mxu0
    %663 = vmatprep.mubr.f32.mxu0 0.0
    %664 = vmatmul.mubr.f32.gmra.mrb[0].mxu0 %v528
    %v665 = vpop.f32.mrb[0].mxu0
    %v666 = vadd.f32 0.0, %v665
    %v667 = vpop.f32.mrb[0].mxu0
    %668 = vmatprep.mubr.f32.mxu0 0.0
    %669 = vmatmul.mubr.f32.gmra.mrb[0].mxu0 %v531
    %v670 = vpop.f32.mrb[0].mxu0
    %v671 = vadd.f32 0.0, %v670
    %v672 = vpop.f32.mrb[0].mxu0
    %673 = vmatprep.mubr.f32.mxu0 0.0
    %674 = vmatmul.mubr.f32.gmra.mrb[0].mxu0 %v534
    %v675 = vpop.f32.mrb[0].mxu0
    %v676 = vadd.f32 0.0, %v675
    %v677 = vpop.f32.mrb[0].mxu0
    %678 = vmatprep.mubr.f32.mxu0 0.0
    %679 = vmatmul.mubr.f32.gmra.mrb[0].mxu0 %v537
    %v680 = vpop.f32.mrb[0].mxu0
    %v681 = vadd.f32 0.0, %v680
    %v682 = vpop.f32.mrb[0].mxu0
    %683 = vdwg.mxu0
    %v685 = vsel %vm90, %v443, 0
    %v688 = vsel %vm90, %v444, 0
    %v691 = vsel %vm90, %v445, 0
    %v694 = vsel %vm90, %v446, 0
    %v697 = vsel %vm90, %v447, 0
    %v700 = vsel %vm90, %v448, 0
    %v703 = vsel %vm90, %v449, 0
    %v706 = vsel %vm90, %v450, 0
    %v709 = vsel %vm90, %v451, 0
    %v712 = vsel %vm90, %v452, 0
    %v715 = vsel %vm90, %v453, 0
    %v718 = vsel %vm90, %v454, 0
    %v721 = vsel %vm90, %v455, 0
    %v724 = vsel %vm90, %v456, 0
    %v727 = vsel %vm90, %v457, 0
    %v730 = vsel %vm90, %v458, 0
    %732 = vmatprep.subr.mxu0 0.0
    %733 = vmatpush1.msra.mxu0 %v475
    %734 = vmatprep.subr.mxu0 0.0
    %735 = vmatpush1.msra.mxu0 %v476
    %736 = vmatprep.subr.mxu0 0.0
    %737 = vmatpush1.msra.mxu0 %v477
    %738 = vmatprep.subr.mxu0 0.0
    %739 = vmatpush1.msra.mxu0 %v478
    %740 = vmatprep.subr.mxu0 0.0
    %741 = vmatpush1.msra.mxu0 %v479
    %742 = vmatprep.subr.mxu0 0.0
    %743 = vmatpush1.msra.mxu0 %v480
    %744 = vmatprep.subr.mxu0 0.0
    %745 = vmatpush1.msra.mxu0 %v481
    %746 = vmatprep.subr.mxu0 0.0
    %747 = vmatpush1.msra.mxu0 %v482
    %748 = vmatprep.subr.mxu0 0.0
    %749 = vmatpush1.msra.mxu0 0.0
    %750 = vmatprep.subr.mxu0 0.0
    %751 = vmatpush1.msra.mxu0 0.0
    %752 = vmatprep.subr.mxu0 0.0
    %753 = vmatpush1.msra.mxu0 0.0
    %754 = vmatprep.subr.mxu0 0.0
    %755 = vmatpush1.msra.mxu0 0.0
    %756 = vmatprep.subr.mxu0 0.0
    %757 = vmatpush1.msra.mxu0 0.0
    %758 = vmatprep.subr.mxu0 0.0
    %759 = vmatpush1.msra.mxu0 0.0
    %760 = vmatprep.subr.mxu0 0.0
    %761 = vmatpush1.msra.mxu0 0.0
    %762 = vmatprep.subr.mxu0 0.0
    %763 = vmatpush1.msra.mxu0 0.0
    %764 = vmatprep.subr.mxu0 0.0
    %765 = vmatpush1.msra.mxu0 0.0
    %766 = vmatprep.subr.mxu0 0.0
    %767 = vmatpush1.msra.mxu0 0.0
    %768 = vmatprep.subr.mxu0 0.0
    %769 = vmatpush1.msra.mxu0 0.0
    %770 = vmatprep.subr.mxu0 0.0
    %771 = vmatpush1.msra.mxu0 0.0
    %772 = vmatprep.subr.mxu0 0.0
    %773 = vmatpush1.msra.mxu0 0.0
    %774 = vmatprep.subr.mxu0 0.0
    %775 = vmatpush1.msra.mxu0 0.0
    %776 = vmatprep.subr.mxu0 0.0
    %777 = vmatpush1.msra.mxu0 0.0
    %778 = vmatprep.subr.mxu0 0.0
    %779 = vmatpush1.msra.mxu0 0.0
    %780 = vmatprep.subr.mxu0 0.0
    %781 = vmatpush1.msra.mxu0 0.0
    %782 = vmatprep.subr.mxu0 0.0
    %783 = vmatpush1.msra.mxu0 0.0
    %784 = vmatprep.subr.mxu0 0.0
    %785 = vmatpush1.msra.mxu0 0.0
    %786 = vmatprep.subr.mxu0 0.0
    %787 = vmatpush1.msra.mxu0 0.0
    %788 = vmatprep.subr.mxu0 0.0
    %789 = vmatpush1.msra.mxu0 0.0
    %790 = vmatprep.subr.mxu0 0.0
    %791 = vmatpush1.msra.mxu0 0.0
    %792 = vmatprep.subr.mxu0 0.0
    %793 = vmatpush1.msra.mxu0 0.0
    %794 = vmatprep.subr.mxu0 0.0
    %795 = vmatpush1.msra.mxu0 0.0
    %796 = vmatprep.mubr.f32.mxu0 0.0
    %797 = vmatmul.mubr.f32.gmra.mrb[0].mxu0 %v685
    %v798 = vpop.f32.mrb[0].mxu0
    %v799 = vadd.f32 %v606, %v798
    %v800 = vpop.f32.mrb[0].mxu0
    %801 = vmatprep.mubr.f32.mxu0 0.0
    %802 = vmatmul.mubr.f32.gmra.mrb[0].mxu0 %v688
    %v803 = vpop.f32.mrb[0].mxu0
    %v804 = vadd.f32 %v611, %v803
    %v805 = vpop.f32.mrb[0].mxu0
    %806 = vmatprep.mubr.f32.mxu0 0.0
    %807 = vmatmul.mubr.f32.gmra.mrb[0].mxu0 %v691
    %v808 = vpop.f32.mrb[0].mxu0
    %v809 = vadd.f32 %v616, %v808
    %v810 = vpop.f32.mrb[0].mxu0
    %811 = vmatprep.mubr.f32.mxu0 0.0
    %812 = vmatmul.mubr.f32.gmra.mrb[0].mxu0 %v694
    %v813 = vpop.f32.mrb[0].mxu0
    %v814 = vadd.f32 %v621, %v813
    %v815 = vpop.f32.mrb[0].mxu0
    %816 = vmatprep.mubr.f32.mxu0 0.0
    %817 = vmatmul.mubr.f32.gmra.mrb[0].mxu0 %v697
    %v818 = vpop.f32.mrb[0].mxu0
    %v819 = vadd.f32 %v626, %v818
    %v820 = vpop.f32.mrb[0].mxu0
    %821 = vmatprep.mubr.f32.mxu0 0.0
    %822 = vmatmul.mubr.f32.gmra.mrb[0].mxu0 %v700
    %v823 = vpop.f32.mrb[0].mxu0
    %v824 = vadd.f32 %v631, %v823
    %v825 = vpop.f32.mrb[0].mxu0
    %826 = vmatprep.mubr.f32.mxu0 0.0
    %827 = vmatmul.mubr.f32.gmra.mrb[0].mxu0 %v703
    %v828 = vpop.f32.mrb[0].mxu0
    %v829 = vadd.f32 %v636, %v828
    %v830 = vpop.f32.mrb[0].mxu0
    %831 = vmatprep.mubr.f32.mxu0 0.0
    %832 = vmatmul.mubr.f32.gmra.mrb[0].mxu0 %v706
    %v833 = vpop.f32.mrb[0].mxu0
    %v834 = vadd.f32 %v641, %v833
    %v835 = vpop.f32.mrb[0].mxu0
    %836 = vmatprep.mubr.f32.mxu0 0.0
    %837 = vmatmul.mubr.f32.gmra.mrb[0].mxu0 %v709
    %v838 = vpop.f32.mrb[0].mxu0
    %v839 = vadd.f32 %v646, %v838
    %v840 = vpop.f32.mrb[0].mxu0
    %841 = vmatprep.mubr.f32.mxu0 0.0
    %842 = vmatmul.mubr.f32.gmra.mrb[0].mxu0 %v712
    %v843 = vpop.f32.mrb[0].mxu0
    %v844 = vadd.f32 %v651, %v843
    %v845 = vpop.f32.mrb[0].mxu0
    %846 = vmatprep.mubr.f32.mxu0 0.0
    %847 = vmatmul.mubr.f32.gmra.mrb[0].mxu0 %v715
    %v848 = vpop.f32.mrb[0].mxu0
    %v849 = vadd.f32 %v656, %v848
    %v850 = vpop.f32.mrb[0].mxu0
    %851 = vmatprep.mubr.f32.mxu0 0.0
    %852 = vmatmul.mubr.f32.gmra.mrb[0].mxu0 %v718
    %v853 = vpop.f32.mrb[0].mxu0
    %v854 = vadd.f32 %v661, %v853
    %v855 = vpop.f32.mrb[0].mxu0
    %856 = vmatprep.mubr.f32.mxu0 0.0
    %857 = vmatmul.mubr.f32.gmra.mrb[0].mxu0 %v721
    %v858 = vpop.f32.mrb[0].mxu0
    %v859 = vadd.f32 %v666, %v858
    %v860 = vpop.f32.mrb[0].mxu0
    %861 = vmatprep.mubr.f32.mxu0 0.0
    %862 = vmatmul.mubr.f32.gmra.mrb[0].mxu0 %v724
    %v863 = vpop.f32.mrb[0].mxu0
    %v864 = vadd.f32 %v671, %v863
    %v865 = vpop.f32.mrb[0].mxu0
    %866 = vmatprep.mubr.f32.mxu0 0.0
    %867 = vmatmul.mubr.f32.gmra.mrb[0].mxu0 %v727
    %v868 = vpop.f32.mrb[0].mxu0
    %v869 = vadd.f32 %v676, %v868
    %v870 = vpop.f32.mrb[0].mxu0
    %871 = vmatprep.mubr.f32.mxu0 0.0
    %872 = vmatmul.mubr.f32.gmra.mrb[0].mxu0 %v730
    %v873 = vpop.f32.mrb[0].mxu0
    %v874 = vadd.f32 %v681, %v873
    %v875 = vpop.f32.mrb[0].mxu0
    %876 = vdwg.mxu0
    %v877 = vld [vmem:[%s3] sm:$0x1]
    %v879 = vlaneseq
    %v880 = vshrl.u32 %v879, 7
    %v881 = vsub.s32 0, %v880
    %v882 = vrot.slane %v877, %v881
    %v884 = vadd.f32 %v799, %v882
    %v885 = vadd.f32 %v804, %v882
    %v886 = vadd.f32 %v809, %v882
    %v887 = vadd.f32 %v814, %v882
    %v888 = vadd.f32 %v819, %v882
    %v889 = vadd.f32 %v824, %v882
    %v890 = vadd.f32 %v829, %v882
    %v891 = vadd.f32 %v834, %v882
    %v892 = vadd.f32 %v839, %v882
    %v893 = vadd.f32 %v844, %v882
    %v894 = vadd.f32 %v849, %v882
    %v895 = vadd.f32 %v854, %v882
    %v896 = vadd.f32 %v859, %v882
    %v897 = vadd.f32 %v864, %v882
    %v898 = vadd.f32 %v869, %v882
    %v899 = vadd.f32 %v874, %v882
    %900 = vst.msk [vmem:[%s4] sm:$0xff] %vm90, %v884
    %901 = vst.msk [vmem:[%s4 + $0x8] sm:$0xff] %vm90, %v885
    %902 = vst.msk [vmem:[%s4 + $0x10] sm:$0xff] %vm90, %v886
    %903 = vst.msk [vmem:[%s4 + $0x18] sm:$0xff] %vm90, %v887
    %904 = vst.msk [vmem:[%s4 + $0x20] sm:$0xff] %vm90, %v888
    %905 = vst.msk [vmem:[%s4 + $0x28] sm:$0xff] %vm90, %v889
    %906 = vst.msk [vmem:[%s4 + $0x30] sm:$0xff] %vm90, %v890
    %907 = vst.msk [vmem:[%s4 + $0x38] sm:$0xff] %vm90, %v891
    %908 = vst.msk [vmem:[%s4 + $0x40] sm:$0xff] %vm90, %v892
    %909 = vst.msk [vmem:[%s4 + $0x48] sm:$0xff] %vm90, %v893
    %910 = vst.msk [vmem:[%s4 + $0x50] sm:$0xff] %vm90, %v894
    %911 = vst.msk [vmem:[%s4 + $0x58] sm:$0xff] %vm90, %v895
    %912 = vst.msk [vmem:[%s4 + $0x60] sm:$0xff] %vm90, %v896
    %913 = vst.msk [vmem:[%s4 + $0x68] sm:$0xff] %vm90, %v897
    %914 = vst.msk [vmem:[%s4 + $0x70] sm:$0xff] %vm90, %v898
    %915 = vst.msk [vmem:[%s4 + $0x78] sm:$0xff] %vm90, %v899
    // Predicated region
    $region30: #{tpu_custom_call.1} parent=1 // pred_check
      _
    $region31: #{tpu_custom_call.1} parent=1 // pred_check_branch
      %917 = sbr.rel (0) target = $region33
    $region32: #{tpu_custom_call.1} parent=1 // pred_region
      _
    $region33: #{tpu_custom_call.1} parent=1 // pred_fallthru
      _
    // Predicated region
    $region34: #{tpu_custom_call.1} parent=1 // pred_check
      _
    $region35: #{tpu_custom_call.1} parent=1 // pred_check_branch
      %919 = sbr.rel (0) target = $region37
    $region36: #{tpu_custom_call.1} parent=1 // pred_region
      _
    $region37: #{tpu_custom_call.1} parent=1 // pred_fallthru
      _
    %920 = vsyncpa [#allocation3], 1
    %921 = vsyncpa [#allocation5], 1

</llo_original>
